<compile_context>
chip_gen: v7x
topology: tpu7x:2x2x1
jax: 0.10.0
libtpu: 0.0.40
codegen_flags: <defaults>
</compile_context>

<pallas_src>
import functools
import math

import jax
import jax.numpy as jnp
from jax import lax
from jax.experimental import pallas as pl
from jax.experimental.pallas import tpu as pltpu


# -----------------------------------------------------------------------------
# Fused Pallas kernel: one program per batch element.
# -----------------------------------------------------------------------------

def _fused_attention_kernel(x_ref, pk_ref, pv_ref, wqkv_ref, bqkv_ref,
                            wproj_ref, bproj_ref, out_ref, attn_ref,
                            *, num_heads, scale):
    N, C = x_ref.shape[1], x_ref.shape[2]
    H = num_heads
    d = C // H

    # ---- QKV projection: bf16 inputs (x already bf16), f32 accumulate. ----
    qkv = jnp.dot(x_ref[0], wqkv_ref[...],
                  preferred_element_type=jnp.float32) + bqkv_ref[...]    # (N, 3C) f32

    # Fold the softmax scale into q: one N*C multiply instead of H*N*L.
    q_bf = (qkv[:, 0 * C:1 * C] * scale).astype(jnp.bfloat16)            # (N, C)
    # Prepend prompt keys / values (prompts are shared across the batch).
    # TODO(synk): at production sizes pad P to a sublane multiple (or compute
    #             prompt-scores and sequence-scores as two lane-dense matmuls
    #             merged with a running max/sum) to avoid the misaligned concat.
    k_bf = jnp.concatenate([pk_ref[...], qkv[:, 1 * C:2 * C]],
                           axis=0).astype(jnp.bfloat16)                  # (L, C)
    v_bf = jnp.concatenate([pv_ref[...], qkv[:, 2 * C:3 * C]],
                           axis=0).astype(jnp.bfloat16)                  # (L, C)

    # Contract the last (head-feature) dim of q against the last dim of k:
    # no transposed copy of k is materialized.
    dn = (((1,), (1,)), ((), ()))

    # TODO(synk): at production N, bound per-head live ranges with a visible
    #             loop / extra grid axis instead of a static Python unroll.
    o_parts = []
    for h in range(H):
        sl = slice(h * d, (h + 1) * d)
        s = lax.dot_general(q_bf[:, sl], k_bf[:, sl], dn,
                            preferred_element_type=jnp.float32)          # (N, L) f32
        m = jnp.max(s, axis=-1, keepdims=True)
        e = jnp.exp(s - m)
        # Exact reciprocal: attn is returned to the caller and must row-sum to 1.
        p = e * pl.reciprocal(jnp.sum(e, axis=-1, keepdims=True))
        attn_ref[0, h] = p                                               # (N, L) f32
        o_parts.append(jnp.dot(p.astype(jnp.bfloat16), v_bf[:, sl],
                               preferred_element_type=jnp.float32))      # (N, d) f32

    # Head merge once, then ONE full-K output projection (K = C, not K = d).
    o_all = jnp.concatenate(o_parts, axis=-1).astype(jnp.bfloat16)       # (N, C)
    out_ref[0] = (jnp.dot(o_all, wproj_ref[...],
                          preferred_element_type=jnp.float32)
                  + bproj_ref[...])                                      # (N, C) f32


# -----------------------------------------------------------------------------
# Module wrapper (parameter setup + a single fused pallas_call)
# -----------------------------------------------------------------------------

class AttentionPallas:
    def __init__(self, dim, num_heads=8, qkv_bias=False, qk_scale=None, *, key):
        self.num_heads = num_heads
        head_dim = dim // num_heads
        self.scale = qk_scale or head_dim ** (-0.5)

        k1, k2, k3 = jax.random.split(key, 3)
        # Weights stored as bf16 (MXU inputs / halved HBM traffic); f32 accumulate.
        self.w_qkv = (jax.random.normal(k1, (dim, 3 * dim), jnp.float32)
                      * (1.0 / math.sqrt(dim))).astype(jnp.bfloat16)
        self.b_qkv = (jnp.zeros((1, 3 * dim), jnp.float32) if not qkv_bias
                      else jax.random.normal(k3, (1, 3 * dim), jnp.float32) * 0.01)
        self.w_proj = (jax.random.normal(k2, (dim, dim), jnp.float32)
                       * (1.0 / math.sqrt(dim))).astype(jnp.bfloat16)
        self.b_proj = jnp.zeros((1, dim), jnp.float32)
        # attn_drop / proj_drop default to 0.0 -> identity (eval semantics).

    def __call__(self, x, mask=None, prompts=None, learnt_p=True):
        if mask is not None:
            # TODO(synk): boolean key-mask (masked_fill with -inf BEFORE the row
            #             max) not implemented; mask is None in the reference.
            raise NotImplementedError("mask path not implemented")

        B, N, C = x.shape
        H = self.num_heads
        P_total = prompts.shape[1]

        # prompts are identical for every batch element (repeat(B,1,1) in torch),
        # so pass a single copy and let each program reuse it.
        if learnt_p:
            P = P_total // 2
            pk = prompts[0, :P]           # (P, C) key prompts
            pv = prompts[0, P:]           # (P, C) value prompts
        else:
            P = P_total
            pk = prompts[0]
            pv = prompts[0]
        L = N + P

        # Cast activations to bf16 at the boundary: halves input DMA bytes
        # (MXU consumes bf16 anyway); accumulation stays f32 in-kernel.
        x_bf = x.astype(jnp.bfloat16)

        kernel = functools.partial(_fused_attention_kernel,
                                   num_heads=H, scale=self.scale)

        out, attn = pl.pallas_call(
            kernel,
            grid=(B,),
            in_specs=[
                pl.BlockSpec((1, N, C), lambda b: (b, 0, 0)),      # x (bf16)
                pl.BlockSpec((P, C), lambda b: (0, 0)),            # prompt keys
                pl.BlockSpec((P, C), lambda b: (0, 0)),            # prompt values
                pl.BlockSpec((C, 3 * C), lambda b: (0, 0)),        # W_qkv (bf16)
                pl.BlockSpec((1, 3 * C), lambda b: (0, 0)),        # b_qkv
                pl.BlockSpec((C, C), lambda b: (0, 0)),            # W_proj (bf16)
                pl.BlockSpec((1, C), lambda b: (0, 0)),            # b_proj
            ],
            out_specs=[
                pl.BlockSpec((1, N, C), lambda b: (b, 0, 0)),          # out
                pl.BlockSpec((1, H, N, L), lambda b: (b, 0, 0, 0)),    # attn
            ],
            out_shape=(
                jax.ShapeDtypeStruct((B, N, C), jnp.float32),
                jax.ShapeDtypeStruct((B, H, N, L), jnp.float32),
            ),
            compiler_params=pltpu.CompilerParams(
                dimension_semantics=("parallel",),   # batch axis -> both v7x TCs
            ),
        )(x_bf, pk, pv, self.w_qkv, self.b_qkv, self.w_proj, self.b_proj)

        return out, attn


# -----------------------------------------------------------------------------
# Pure-JAX reference (f32) for the correctness check
# -----------------------------------------------------------------------------

def reference_forward(mod, x, prompts, learnt_p=True):
    B, N, C = x.shape
    H, d = mod.num_heads, C // mod.num_heads
    wq = mod.w_qkv.astype(jnp.float32)
    wp = mod.w_proj.astype(jnp.float32)
    prompts_b = jnp.broadcast_to(prompts, (B,) + prompts.shape[1:])
    P_total = prompts_b.shape[1]
    qkv = (x.reshape(B * N, C) @ wq + mod.b_qkv).reshape(B, N, 3, C)
    if learnt_p:
        P = P_total // 2
        pk, pv = prompts_b[:, :P], prompts_b[:, P:]
    else:
        P = P_total
        pk = pv = prompts_b
    q = qkv[:, :, 0, :].reshape(B, N, H, d).transpose(0, 2, 1, 3)
    k = jnp.concatenate([pk, qkv[:, :, 1, :]], 1).reshape(B, N + P, H, d).transpose(0, 2, 1, 3)
    v = jnp.concatenate([pv, qkv[:, :, 2, :]], 1).reshape(B, N + P, H, d).transpose(0, 2, 1, 3)
    s = jnp.einsum("bhnd,bhld->bhnl", q, k) * mod.scale
    attn = jax.nn.softmax(s, axis=-1)
    o = jnp.einsum("bhnl,bhld->bhnd", attn, v).transpose(0, 2, 1, 3).reshape(B, N, C)
    o = (o.reshape(B * N, C) @ wp + mod.b_proj).reshape(B, N, C)
    return o, attn


# -----------------------------------------------------------------------------
# Main
# -----------------------------------------------------------------------------

if __name__ == "__main__":
    key = jax.random.PRNGKey(0)
    k_x, k_p, k_w = jax.random.split(key, 3)

    B, N, C = 2, 16, 64          # dim=64, num_heads=8 -> head_dim=8
    H = 8
    P_TOTAL = 8                  # learnt_p=True -> 4 key prompts + 4 value prompts

    x = jax.random.normal(k_x, (B, N, C), jnp.float32)
    prompts = jax.random.normal(k_p, (1, P_TOTAL, C), jnp.float32)

    mod = AttentionPallas(dim=C, num_heads=H, key=k_w)

    out, attn = mod(x, mask=None, prompts=prompts, learnt_p=True)
    out = jax.block_until_ready(out)
    attn = jax.block_until_ready(attn)

    ref_out, ref_attn = reference_forward(mod, x, prompts, learnt_p=True)
    assert out.shape == (B, N, C)
    assert attn.shape == (B, H, N, N + P_TOTAL // 2)
    # bf16 MXU inputs (x, weights, probs) -> relaxed but structural-bug-catching
    # tolerances; softmax statistics and all accumulations are f32.
    assert jnp.allclose(out, ref_out, atol=5e-2, rtol=5e-2)
    assert jnp.allclose(attn, ref_attn, atol=2e-2, rtol=2e-2)
    # softmax rows must sum to 1 (exact reciprocal in-kernel)
    assert jnp.allclose(attn.sum(-1), 1.0, atol=1e-3)

    print("KERNEL_OK")
</pallas_src>

<mosaic_0001>
module attributes {stable_mosaic.version = 11 : i64} {
  func.func @_fused_attention_kernel(%arg0: i32, %arg1: memref<1x16x64xbf16, #tpu.memory_space<vmem>>, %arg2: memref<4x64xf32, #tpu.memory_space<vmem>>, %arg3: memref<4x64xf32, #tpu.memory_space<vmem>>, %arg4: memref<64x192xbf16, #tpu.memory_space<vmem>>, %arg5: memref<1x192xf32, #tpu.memory_space<vmem>>, %arg6: memref<64x64xbf16, #tpu.memory_space<vmem>>, %arg7: memref<1x64xf32, #tpu.memory_space<vmem>>, %arg8: memref<1x16x64xf32, #tpu.memory_space<vmem>>, %arg9: memref<1x8x16x20xf32, #tpu.memory_space<vmem>>) attributes {dimension_semantics = [#tpu.dimension_semantics<parallel>], iteration_bounds = array<i64: 2>, scalar_prefetch = 0 : i64, scratch_operands = 0 : i64, tpu.core_type = #tpu.core_type<tc>, window_params = [{transform_indices = @transform_0, window_bounds = array<i64: 1, 16, 64>}, {pipeline_mode = #tpu.pipeline_mode<synchronous>, transform_indices = @transform_1, window_bounds = array<i64: 4, 64>}, {pipeline_mode = #tpu.pipeline_mode<synchronous>, transform_indices = @transform_2, window_bounds = array<i64: 4, 64>}, {pipeline_mode = #tpu.pipeline_mode<synchronous>, transform_indices = @transform_3, window_bounds = array<i64: 64, 192>}, {pipeline_mode = #tpu.pipeline_mode<synchronous>, transform_indices = @transform_4, window_bounds = array<i64: 1, 192>}, {pipeline_mode = #tpu.pipeline_mode<synchronous>, transform_indices = @transform_5, window_bounds = array<i64: 64, 64>}, {pipeline_mode = #tpu.pipeline_mode<synchronous>, transform_indices = @transform_6, window_bounds = array<i64: 1, 64>}, {transform_indices = @transform_7, window_bounds = array<i64: 1, 16, 64>}, {transform_indices = @transform_8, window_bounds = array<i64: 1, 8, 16, 20>}]} {
    %c0 = arith.constant 0 : index
    %c0_0 = arith.constant 0 : index
    %c0_1 = arith.constant 0 : index
    %0 = vector.load %arg1[%c0, %c0_0, %c0_1] : memref<1x16x64xbf16, #tpu.memory_space<vmem>>, vector<1x16x64xbf16>
    %1 = vector.shape_cast %0 : vector<1x16x64xbf16> to vector<16x64xbf16>
    %c0_2 = arith.constant 0 : index
    %c0_3 = arith.constant 0 : index
    %2 = vector.load %arg4[%c0_2, %c0_3] : memref<64x192xbf16, #tpu.memory_space<vmem>>, vector<64x192xbf16>
    %cst = arith.constant dense<0.000000e+00> : vector<16x192xf32>
    %3 = tpu.matmul %1, %2, %cst {dimension_numbers = #tpu.dot_dimension_numbers<[1], [0], [0], [1], [0, 0, 1, 1], [], []>} : vector<16x64xbf16>, vector<64x192xbf16>, vector<16x192xf32> -> vector<16x192xf32>
    %c0_4 = arith.constant 0 : index
    %c0_5 = arith.constant 0 : index
    %4 = vector.load %arg5[%c0_4, %c0_5] : memref<1x192xf32, #tpu.memory_space<vmem>>, vector<1x192xf32>
    %5 = vector.broadcast %4 : vector<1x192xf32> to vector<16x192xf32>
    %6 = arith.addf %3, %5 : vector<16x192xf32>
    %7 = vector.extract_strided_slice %6 {offsets = [0, 0], sizes = [16, 64], strides = [1, 1]} : vector<16x192xf32> to vector<16x64xf32>
    %cst_6 = arith.constant 0.353553385 : f32
    %8 = vector.broadcast %cst_6 : f32 to vector<16x64xf32>
    %9 = arith.mulf %7, %8 : vector<16x64xf32>
    %10 = arith.truncf %9 : vector<16x64xf32> to vector<16x64xbf16>
    %c0_7 = arith.constant 0 : index
    %c0_8 = arith.constant 0 : index
    %11 = vector.load %arg2[%c0_7, %c0_8] : memref<4x64xf32, #tpu.memory_space<vmem>>, vector<4x64xf32>
    %12 = vector.extract_strided_slice %6 {offsets = [0, 64], sizes = [16, 64], strides = [1, 1]} : vector<16x192xf32> to vector<16x64xf32>
    %13 = tpu.concatenate %11, %12 in 0 : vector<4x64xf32>, vector<16x64xf32> -> vector<20x64xf32>
    %14 = arith.truncf %13 : vector<20x64xf32> to vector<20x64xbf16>
    %c0_9 = arith.constant 0 : index
    %c0_10 = arith.constant 0 : index
    %15 = vector.load %arg3[%c0_9, %c0_10] : memref<4x64xf32, #tpu.memory_space<vmem>>, vector<4x64xf32>
    %16 = vector.extract_strided_slice %6 {offsets = [0, 128], sizes = [16, 64], strides = [1, 1]} : vector<16x192xf32> to vector<16x64xf32>
    %17 = tpu.concatenate %15, %16 in 0 : vector<4x64xf32>, vector<16x64xf32> -> vector<20x64xf32>
    %18 = arith.truncf %17 : vector<20x64xf32> to vector<20x64xbf16>
    %19 = vector.extract_strided_slice %10 {offsets = [0, 0], sizes = [16, 8], strides = [1, 1]} : vector<16x64xbf16> to vector<16x8xbf16>
    %20 = vector.extract_strided_slice %14 {offsets = [0, 0], sizes = [20, 8], strides = [1, 1]} : vector<20x64xbf16> to vector<20x8xbf16>
    %cst_11 = arith.constant dense<0.000000e+00> : vector<16x20xf32>
    %21 = tpu.matmul %19, %20, %cst_11 {dimension_numbers = #tpu.dot_dimension_numbers<[1], [1], [0], [0], [0, 0, 1, 0], [], []>} : vector<16x8xbf16>, vector<20x8xbf16>, vector<16x20xf32> -> vector<16x20xf32>
    %cst_12 = arith.constant dense<0xFF800000> : vector<16xf32>
    %22 = vector.multi_reduction <maximumf>, %21, %cst_12 [1] : vector<16x20xf32> to vector<16xf32>
    %23 = vector.shape_cast %22 : vector<16xf32> to vector<16x1xf32>
    %24 = vector.broadcast %23 : vector<16x1xf32> to vector<16x20xf32>
    %25 = arith.subf %21, %24 : vector<16x20xf32>
    %26 = math.exp %25 : vector<16x20xf32>
    %cst_13 = arith.constant dense<0.000000e+00> : vector<16xf32>
    %27 = vector.multi_reduction <add>, %26, %cst_13 [1] : vector<16x20xf32> to vector<16xf32>
    %28 = vector.shape_cast %27 : vector<16xf32> to vector<16x1xf32>
    %29 = tpu.reciprocal %28 : vector<16x1xf32> -> vector<16x1xf32>
    %30 = vector.broadcast %29 : vector<16x1xf32> to vector<16x20xf32>
    %31 = arith.mulf %26, %30 : vector<16x20xf32>
    %c0_14 = arith.constant 0 : index
    %c0_15 = arith.constant 0 : index
    %c0_16 = arith.constant 0 : index
    %c0_17 = arith.constant 0 : index
    %32 = vector.load %arg9[%c0_14, %c0_15, %c0_16, %c0_17] : memref<1x8x16x20xf32, #tpu.memory_space<vmem>>, vector<1x1x16x20xf32>
    %33 = vector.shape_cast %32 : vector<1x1x16x20xf32> to vector<16x20xf32>
    %34 = vector.shape_cast %31 : vector<16x20xf32> to vector<1x1x16x20xf32>
    tpu.vector_store %arg9[%c0_14, %c0_15, %c0_16, %c0_17], %34 {strides = array<i32>} : memref<1x8x16x20xf32, #tpu.memory_space<vmem>>, vector<1x1x16x20xf32>,
    %35 = arith.truncf %31 : vector<16x20xf32> to vector<16x20xbf16>
    %36 = vector.extract_strided_slice %18 {offsets = [0, 0], sizes = [20, 8], strides = [1, 1]} : vector<20x64xbf16> to vector<20x8xbf16>
    %cst_18 = arith.constant dense<0.000000e+00> : vector<16x8xf32>
    %37 = tpu.matmul %35, %36, %cst_18 {dimension_numbers = #tpu.dot_dimension_numbers<[1], [0], [0], [1], [0, 0, 1, 1], [], []>} : vector<16x20xbf16>, vector<20x8xbf16>, vector<16x8xf32> -> vector<16x8xf32>
    %38 = vector.extract_strided_slice %10 {offsets = [0, 8], sizes = [16, 8], strides = [1, 1]} : vector<16x64xbf16> to vector<16x8xbf16>
    %39 = vector.extract_strided_slice %14 {offsets = [0, 8], sizes = [20, 8], strides = [1, 1]} : vector<20x64xbf16> to vector<20x8xbf16>
    %cst_19 = arith.constant dense<0.000000e+00> : vector<16x20xf32>
    %40 = tpu.matmul %38, %39, %cst_19 {dimension_numbers = #tpu.dot_dimension_numbers<[1], [1], [0], [0], [0, 0, 1, 0], [], []>} : vector<16x8xbf16>, vector<20x8xbf16>, vector<16x20xf32> -> vector<16x20xf32>
    %cst_20 = arith.constant dense<0xFF800000> : vector<16xf32>
    %41 = vector.multi_reduction <maximumf>, %40, %cst_20 [1] : vector<16x20xf32> to vector<16xf32>
    %42 = vector.shape_cast %41 : vector<16xf32> to vector<16x1xf32>
    %43 = vector.broadcast %42 : vector<16x1xf32> to vector<16x20xf32>
    %44 = arith.subf %40, %43 : vector<16x20xf32>
    %45 = math.exp %44 : vector<16x20xf32>
    %cst_21 = arith.constant dense<0.000000e+00> : vector<16xf32>
    %46 = vector.multi_reduction <add>, %45, %cst_21 [1] : vector<16x20xf32> to vector<16xf32>
    %47 = vector.shape_cast %46 : vector<16xf32> to vector<16x1xf32>
    %48 = tpu.reciprocal %47 : vector<16x1xf32> -> vector<16x1xf32>
    %49 = vector.broadcast %48 : vector<16x1xf32> to vector<16x20xf32>
    %50 = arith.mulf %45, %49 : vector<16x20xf32>
    %c0_22 = arith.constant 0 : index
    %c1 = arith.constant 1 : index
    %c0_23 = arith.constant 0 : index
    %c0_24 = arith.constant 0 : index
    %51 = vector.load %arg9[%c0_22, %c1, %c0_23, %c0_24] : memref<1x8x16x20xf32, #tpu.memory_space<vmem>>, vector<1x1x16x20xf32>
    %52 = vector.shape_cast %51 : vector<1x1x16x20xf32> to vector<16x20xf32>
    %53 = vector.shape_cast %50 : vector<16x20xf32> to vector<1x1x16x20xf32>
    tpu.vector_store %arg9[%c0_22, %c1, %c0_23, %c0_24], %53 {strides = array<i32>} : memref<1x8x16x20xf32, #tpu.memory_space<vmem>>, vector<1x1x16x20xf32>,
    %54 = arith.truncf %50 : vector<16x20xf32> to vector<16x20xbf16>
    %55 = vector.extract_strided_slice %18 {offsets = [0, 8], sizes = [20, 8], strides = [1, 1]} : vector<20x64xbf16> to vector<20x8xbf16>
    %cst_25 = arith.constant dense<0.000000e+00> : vector<16x8xf32>
    %56 = tpu.matmul %54, %55, %cst_25 {dimension_numbers = #tpu.dot_dimension_numbers<[1], [0], [0], [1], [0, 0, 1, 1], [], []>} : vector<16x20xbf16>, vector<20x8xbf16>, vector<16x8xf32> -> vector<16x8xf32>
    %57 = vector.extract_strided_slice %10 {offsets = [0, 16], sizes = [16, 8], strides = [1, 1]} : vector<16x64xbf16> to vector<16x8xbf16>
    %58 = vector.extract_strided_slice %14 {offsets = [0, 16], sizes = [20, 8], strides = [1, 1]} : vector<20x64xbf16> to vector<20x8xbf16>
    %cst_26 = arith.constant dense<0.000000e+00> : vector<16x20xf32>
    %59 = tpu.matmul %57, %58, %cst_26 {dimension_numbers = #tpu.dot_dimension_numbers<[1], [1], [0], [0], [0, 0, 1, 0], [], []>} : vector<16x8xbf16>, vector<20x8xbf16>, vector<16x20xf32> -> vector<16x20xf32>
    %cst_27 = arith.constant dense<0xFF800000> : vector<16xf32>
    %60 = vector.multi_reduction <maximumf>, %59, %cst_27 [1] : vector<16x20xf32> to vector<16xf32>
    %61 = vector.shape_cast %60 : vector<16xf32> to vector<16x1xf32>
    %62 = vector.broadcast %61 : vector<16x1xf32> to vector<16x20xf32>
    %63 = arith.subf %59, %62 : vector<16x20xf32>
    %64 = math.exp %63 : vector<16x20xf32>
    %cst_28 = arith.constant dense<0.000000e+00> : vector<16xf32>
    %65 = vector.multi_reduction <add>, %64, %cst_28 [1] : vector<16x20xf32> to vector<16xf32>
    %66 = vector.shape_cast %65 : vector<16xf32> to vector<16x1xf32>
    %67 = tpu.reciprocal %66 : vector<16x1xf32> -> vector<16x1xf32>
    %68 = vector.broadcast %67 : vector<16x1xf32> to vector<16x20xf32>
    %69 = arith.mulf %64, %68 : vector<16x20xf32>
    %c0_29 = arith.constant 0 : index
    %c2 = arith.constant 2 : index
    %c0_30 = arith.constant 0 : index
    %c0_31 = arith.constant 0 : index
    %70 = vector.load %arg9[%c0_29, %c2, %c0_30, %c0_31] : memref<1x8x16x20xf32, #tpu.memory_space<vmem>>, vector<1x1x16x20xf32>
    %71 = vector.shape_cast %70 : vector<1x1x16x20xf32> to vector<16x20xf32>
    %72 = vector.shape_cast %69 : vector<16x20xf32> to vector<1x1x16x20xf32>
    tpu.vector_store %arg9[%c0_29, %c2, %c0_30, %c0_31], %72 {strides = array<i32>} : memref<1x8x16x20xf32, #tpu.memory_space<vmem>>, vector<1x1x16x20xf32>,
    %73 = arith.truncf %69 : vector<16x20xf32> to vector<16x20xbf16>
    %74 = vector.extract_strided_slice %18 {offsets = [0, 16], sizes = [20, 8], strides = [1, 1]} : vector<20x64xbf16> to vector<20x8xbf16>
    %cst_32 = arith.constant dense<0.000000e+00> : vector<16x8xf32>
    %75 = tpu.matmul %73, %74, %cst_32 {dimension_numbers = #tpu.dot_dimension_numbers<[1], [0], [0], [1], [0, 0, 1, 1], [], []>} : vector<16x20xbf16>, vector<20x8xbf16>, vector<16x8xf32> -> vector<16x8xf32>
    %76 = vector.extract_strided_slice %10 {offsets = [0, 24], sizes = [16, 8], strides = [1, 1]} : vector<16x64xbf16> to vector<16x8xbf16>
    %77 = vector.extract_strided_slice %14 {offsets = [0, 24], sizes = [20, 8], strides = [1, 1]} : vector<20x64xbf16> to vector<20x8xbf16>
    %cst_33 = arith.constant dense<0.000000e+00> : vector<16x20xf32>
    %78 = tpu.matmul %76, %77, %cst_33 {dimension_numbers = #tpu.dot_dimension_numbers<[1], [1], [0], [0], [0, 0, 1, 0], [], []>} : vector<16x8xbf16>, vector<20x8xbf16>, vector<16x20xf32> -> vector<16x20xf32>
    %cst_34 = arith.constant dense<0xFF800000> : vector<16xf32>
    %79 = vector.multi_reduction <maximumf>, %78, %cst_34 [1] : vector<16x20xf32> to vector<16xf32>
    %80 = vector.shape_cast %79 : vector<16xf32> to vector<16x1xf32>
    %81 = vector.broadcast %80 : vector<16x1xf32> to vector<16x20xf32>
    %82 = arith.subf %78, %81 : vector<16x20xf32>
    %83 = math.exp %82 : vector<16x20xf32>
    %cst_35 = arith.constant dense<0.000000e+00> : vector<16xf32>
    %84 = vector.multi_reduction <add>, %83, %cst_35 [1] : vector<16x20xf32> to vector<16xf32>
    %85 = vector.shape_cast %84 : vector<16xf32> to vector<16x1xf32>
    %86 = tpu.reciprocal %85 : vector<16x1xf32> -> vector<16x1xf32>
    %87 = vector.broadcast %86 : vector<16x1xf32> to vector<16x20xf32>
    %88 = arith.mulf %83, %87 : vector<16x20xf32>
    %c0_36 = arith.constant 0 : index
    %c3 = arith.constant 3 : index
    %c0_37 = arith.constant 0 : index
    %c0_38 = arith.constant 0 : index
    %89 = vector.load %arg9[%c0_36, %c3, %c0_37, %c0_38] : memref<1x8x16x20xf32, #tpu.memory_space<vmem>>, vector<1x1x16x20xf32>
    %90 = vector.shape_cast %89 : vector<1x1x16x20xf32> to vector<16x20xf32>
    %91 = vector.shape_cast %88 : vector<16x20xf32> to vector<1x1x16x20xf32>
    tpu.vector_store %arg9[%c0_36, %c3, %c0_37, %c0_38], %91 {strides = array<i32>} : memref<1x8x16x20xf32, #tpu.memory_space<vmem>>, vector<1x1x16x20xf32>,
    %92 = arith.truncf %88 : vector<16x20xf32> to vector<16x20xbf16>
    %93 = vector.extract_strided_slice %18 {offsets = [0, 24], sizes = [20, 8], strides = [1, 1]} : vector<20x64xbf16> to vector<20x8xbf16>
    %cst_39 = arith.constant dense<0.000000e+00> : vector<16x8xf32>
    %94 = tpu.matmul %92, %93, %cst_39 {dimension_numbers = #tpu.dot_dimension_numbers<[1], [0], [0], [1], [0, 0, 1, 1], [], []>} : vector<16x20xbf16>, vector<20x8xbf16>, vector<16x8xf32> -> vector<16x8xf32>
    %95 = vector.extract_strided_slice %10 {offsets = [0, 32], sizes = [16, 8], strides = [1, 1]} : vector<16x64xbf16> to vector<16x8xbf16>
    %96 = vector.extract_strided_slice %14 {offsets = [0, 32], sizes = [20, 8], strides = [1, 1]} : vector<20x64xbf16> to vector<20x8xbf16>
    %cst_40 = arith.constant dense<0.000000e+00> : vector<16x20xf32>
    %97 = tpu.matmul %95, %96, %cst_40 {dimension_numbers = #tpu.dot_dimension_numbers<[1], [1], [0], [0], [0, 0, 1, 0], [], []>} : vector<16x8xbf16>, vector<20x8xbf16>, vector<16x20xf32> -> vector<16x20xf32>
    %cst_41 = arith.constant dense<0xFF800000> : vector<16xf32>
    %98 = vector.multi_reduction <maximumf>, %97, %cst_41 [1] : vector<16x20xf32> to vector<16xf32>
    %99 = vector.shape_cast %98 : vector<16xf32> to vector<16x1xf32>
    %100 = vector.broadcast %99 : vector<16x1xf32> to vector<16x20xf32>
    %101 = arith.subf %97, %100 : vector<16x20xf32>
    %102 = math.exp %101 : vector<16x20xf32>
    %cst_42 = arith.constant dense<0.000000e+00> : vector<16xf32>
    %103 = vector.multi_reduction <add>, %102, %cst_42 [1] : vector<16x20xf32> to vector<16xf32>
    %104 = vector.shape_cast %103 : vector<16xf32> to vector<16x1xf32>
    %105 = tpu.reciprocal %104 : vector<16x1xf32> -> vector<16x1xf32>
    %106 = vector.broadcast %105 : vector<16x1xf32> to vector<16x20xf32>
    %107 = arith.mulf %102, %106 : vector<16x20xf32>
    %c0_43 = arith.constant 0 : index
    %c4 = arith.constant 4 : index
    %c0_44 = arith.constant 0 : index
    %c0_45 = arith.constant 0 : index
    %108 = vector.load %arg9[%c0_43, %c4, %c0_44, %c0_45] : memref<1x8x16x20xf32, #tpu.memory_space<vmem>>, vector<1x1x16x20xf32>
    %109 = vector.shape_cast %108 : vector<1x1x16x20xf32> to vector<16x20xf32>
    %110 = vector.shape_cast %107 : vector<16x20xf32> to vector<1x1x16x20xf32>
    tpu.vector_store %arg9[%c0_43, %c4, %c0_44, %c0_45], %110 {strides = array<i32>} : memref<1x8x16x20xf32, #tpu.memory_space<vmem>>, vector<1x1x16x20xf32>,
    %111 = arith.truncf %107 : vector<16x20xf32> to vector<16x20xbf16>
    %112 = vector.extract_strided_slice %18 {offsets = [0, 32], sizes = [20, 8], strides = [1, 1]} : vector<20x64xbf16> to vector<20x8xbf16>
    %cst_46 = arith.constant dense<0.000000e+00> : vector<16x8xf32>
    %113 = tpu.matmul %111, %112, %cst_46 {dimension_numbers = #tpu.dot_dimension_numbers<[1], [0], [0], [1], [0, 0, 1, 1], [], []>} : vector<16x20xbf16>, vector<20x8xbf16>, vector<16x8xf32> -> vector<16x8xf32>
    %114 = vector.extract_strided_slice %10 {offsets = [0, 40], sizes = [16, 8], strides = [1, 1]} : vector<16x64xbf16> to vector<16x8xbf16>
    %115 = vector.extract_strided_slice %14 {offsets = [0, 40], sizes = [20, 8], strides = [1, 1]} : vector<20x64xbf16> to vector<20x8xbf16>
    %cst_47 = arith.constant dense<0.000000e+00> : vector<16x20xf32>
    %116 = tpu.matmul %114, %115, %cst_47 {dimension_numbers = #tpu.dot_dimension_numbers<[1], [1], [0], [0], [0, 0, 1, 0], [], []>} : vector<16x8xbf16>, vector<20x8xbf16>, vector<16x20xf32> -> vector<16x20xf32>
    %cst_48 = arith.constant dense<0xFF800000> : vector<16xf32>
    %117 = vector.multi_reduction <maximumf>, %116, %cst_48 [1] : vector<16x20xf32> to vector<16xf32>
    %118 = vector.shape_cast %117 : vector<16xf32> to vector<16x1xf32>
    %119 = vector.broadcast %118 : vector<16x1xf32> to vector<16x20xf32>
    %120 = arith.subf %116, %119 : vector<16x20xf32>
    %121 = math.exp %120 : vector<16x20xf32>
    %cst_49 = arith.constant dense<0.000000e+00> : vector<16xf32>
    %122 = vector.multi_reduction <add>, %121, %cst_49 [1] : vector<16x20xf32> to vector<16xf32>
    %123 = vector.shape_cast %122 : vector<16xf32> to vector<16x1xf32>
    %124 = tpu.reciprocal %123 : vector<16x1xf32> -> vector<16x1xf32>
    %125 = vector.broadcast %124 : vector<16x1xf32> to vector<16x20xf32>
    %126 = arith.mulf %121, %125 : vector<16x20xf32>
    %c0_50 = arith.constant 0 : index
    %c5 = arith.constant 5 : index
    %c0_51 = arith.constant 0 : index
    %c0_52 = arith.constant 0 : index
    %127 = vector.load %arg9[%c0_50, %c5, %c0_51, %c0_52] : memref<1x8x16x20xf32, #tpu.memory_space<vmem>>, vector<1x1x16x20xf32>
    %128 = vector.shape_cast %127 : vector<1x1x16x20xf32> to vector<16x20xf32>
    %129 = vector.shape_cast %126 : vector<16x20xf32> to vector<1x1x16x20xf32>
    tpu.vector_store %arg9[%c0_50, %c5, %c0_51, %c0_52], %129 {strides = array<i32>} : memref<1x8x16x20xf32, #tpu.memory_space<vmem>>, vector<1x1x16x20xf32>,
    %130 = arith.truncf %126 : vector<16x20xf32> to vector<16x20xbf16>
    %131 = vector.extract_strided_slice %18 {offsets = [0, 40], sizes = [20, 8], strides = [1, 1]} : vector<20x64xbf16> to vector<20x8xbf16>
    %cst_53 = arith.constant dense<0.000000e+00> : vector<16x8xf32>
    %132 = tpu.matmul %130, %131, %cst_53 {dimension_numbers = #tpu.dot_dimension_numbers<[1], [0], [0], [1], [0, 0, 1, 1], [], []>} : vector<16x20xbf16>, vector<20x8xbf16>, vector<16x8xf32> -> vector<16x8xf32>
    %133 = vector.extract_strided_slice %10 {offsets = [0, 48], sizes = [16, 8], strides = [1, 1]} : vector<16x64xbf16> to vector<16x8xbf16>
    %134 = vector.extract_strided_slice %14 {offsets = [0, 48], sizes = [20, 8], strides = [1, 1]} : vector<20x64xbf16> to vector<20x8xbf16>
    %cst_54 = arith.constant dense<0.000000e+00> : vector<16x20xf32>
    %135 = tpu.matmul %133, %134, %cst_54 {dimension_numbers = #tpu.dot_dimension_numbers<[1], [1], [0], [0], [0, 0, 1, 0], [], []>} : vector<16x8xbf16>, vector<20x8xbf16>, vector<16x20xf32> -> vector<16x20xf32>
    %cst_55 = arith.constant dense<0xFF800000> : vector<16xf32>
    %136 = vector.multi_reduction <maximumf>, %135, %cst_55 [1] : vector<16x20xf32> to vector<16xf32>
    %137 = vector.shape_cast %136 : vector<16xf32> to vector<16x1xf32>
    %138 = vector.broadcast %137 : vector<16x1xf32> to vector<16x20xf32>
    %139 = arith.subf %135, %138 : vector<16x20xf32>
    %140 = math.exp %139 : vector<16x20xf32>
    %cst_56 = arith.constant dense<0.000000e+00> : vector<16xf32>
    %141 = vector.multi_reduction <add>, %140, %cst_56 [1] : vector<16x20xf32> to vector<16xf32>
    %142 = vector.shape_cast %141 : vector<16xf32> to vector<16x1xf32>
    %143 = tpu.reciprocal %142 : vector<16x1xf32> -> vector<16x1xf32>
    %144 = vector.broadcast %143 : vector<16x1xf32> to vector<16x20xf32>
    %145 = arith.mulf %140, %144 : vector<16x20xf32>
    %c0_57 = arith.constant 0 : index
    %c6 = arith.constant 6 : index
    %c0_58 = arith.constant 0 : index
    %c0_59 = arith.constant 0 : index
    %146 = vector.load %arg9[%c0_57, %c6, %c0_58, %c0_59] : memref<1x8x16x20xf32, #tpu.memory_space<vmem>>, vector<1x1x16x20xf32>
    %147 = vector.shape_cast %146 : vector<1x1x16x20xf32> to vector<16x20xf32>
    %148 = vector.shape_cast %145 : vector<16x20xf32> to vector<1x1x16x20xf32>
    tpu.vector_store %arg9[%c0_57, %c6, %c0_58, %c0_59], %148 {strides = array<i32>} : memref<1x8x16x20xf32, #tpu.memory_space<vmem>>, vector<1x1x16x20xf32>,
    %149 = arith.truncf %145 : vector<16x20xf32> to vector<16x20xbf16>
    %150 = vector.extract_strided_slice %18 {offsets = [0, 48], sizes = [20, 8], strides = [1, 1]} : vector<20x64xbf16> to vector<20x8xbf16>
    %cst_60 = arith.constant dense<0.000000e+00> : vector<16x8xf32>
    %151 = tpu.matmul %149, %150, %cst_60 {dimension_numbers = #tpu.dot_dimension_numbers<[1], [0], [0], [1], [0, 0, 1, 1], [], []>} : vector<16x20xbf16>, vector<20x8xbf16>, vector<16x8xf32> -> vector<16x8xf32>
    %152 = vector.extract_strided_slice %10 {offsets = [0, 56], sizes = [16, 8], strides = [1, 1]} : vector<16x64xbf16> to vector<16x8xbf16>
    %153 = vector.extract_strided_slice %14 {offsets = [0, 56], sizes = [20, 8], strides = [1, 1]} : vector<20x64xbf16> to vector<20x8xbf16>
    %cst_61 = arith.constant dense<0.000000e+00> : vector<16x20xf32>
    %154 = tpu.matmul %152, %153, %cst_61 {dimension_numbers = #tpu.dot_dimension_numbers<[1], [1], [0], [0], [0, 0, 1, 0], [], []>} : vector<16x8xbf16>, vector<20x8xbf16>, vector<16x20xf32> -> vector<16x20xf32>
    %cst_62 = arith.constant dense<0xFF800000> : vector<16xf32>
    %155 = vector.multi_reduction <maximumf>, %154, %cst_62 [1] : vector<16x20xf32> to vector<16xf32>
    %156 = vector.shape_cast %155 : vector<16xf32> to vector<16x1xf32>
    %157 = vector.broadcast %156 : vector<16x1xf32> to vector<16x20xf32>
    %158 = arith.subf %154, %157 : vector<16x20xf32>
    %159 = math.exp %158 : vector<16x20xf32>
    %cst_63 = arith.constant dense<0.000000e+00> : vector<16xf32>
    %160 = vector.multi_reduction <add>, %159, %cst_63 [1] : vector<16x20xf32> to vector<16xf32>
    %161 = vector.shape_cast %160 : vector<16xf32> to vector<16x1xf32>
    %162 = tpu.reciprocal %161 : vector<16x1xf32> -> vector<16x1xf32>
    %163 = vector.broadcast %162 : vector<16x1xf32> to vector<16x20xf32>
    %164 = arith.mulf %159, %163 : vector<16x20xf32>
    %c0_64 = arith.constant 0 : index
    %c7 = arith.constant 7 : index
    %c0_65 = arith.constant 0 : index
    %c0_66 = arith.constant 0 : index
    %165 = vector.load %arg9[%c0_64, %c7, %c0_65, %c0_66] : memref<1x8x16x20xf32, #tpu.memory_space<vmem>>, vector<1x1x16x20xf32>
    %166 = vector.shape_cast %165 : vector<1x1x16x20xf32> to vector<16x20xf32>
    %167 = vector.shape_cast %164 : vector<16x20xf32> to vector<1x1x16x20xf32>
    tpu.vector_store %arg9[%c0_64, %c7, %c0_65, %c0_66], %167 {strides = array<i32>} : memref<1x8x16x20xf32, #tpu.memory_space<vmem>>, vector<1x1x16x20xf32>,
    %168 = arith.truncf %164 : vector<16x20xf32> to vector<16x20xbf16>
    %169 = vector.extract_strided_slice %18 {offsets = [0, 56], sizes = [20, 8], strides = [1, 1]} : vector<20x64xbf16> to vector<20x8xbf16>
    %cst_67 = arith.constant dense<0.000000e+00> : vector<16x8xf32>
    %170 = tpu.matmul %168, %169, %cst_67 {dimension_numbers = #tpu.dot_dimension_numbers<[1], [0], [0], [1], [0, 0, 1, 1], [], []>} : vector<16x20xbf16>, vector<20x8xbf16>, vector<16x8xf32> -> vector<16x8xf32>
    %171 = tpu.concatenate %37, %56, %75, %94, %113, %132, %151, %170 in 1 : vector<16x8xf32>, vector<16x8xf32>, vector<16x8xf32>, vector<16x8xf32>, vector<16x8xf32>, vector<16x8xf32>, vector<16x8xf32>, vector<16x8xf32> -> vector<16x64xf32>
    %172 = arith.truncf %171 : vector<16x64xf32> to vector<16x64xbf16>
    %c0_68 = arith.constant 0 : index
    %c0_69 = arith.constant 0 : index
    %173 = vector.load %arg6[%c0_68, %c0_69] : memref<64x64xbf16, #tpu.memory_space<vmem>>, vector<64x64xbf16>
    %cst_70 = arith.constant dense<0.000000e+00> : vector<16x64xf32>
    %174 = tpu.matmul %172, %173, %cst_70 {dimension_numbers = #tpu.dot_dimension_numbers<[1], [0], [0], [1], [0, 0, 1, 1], [], []>} : vector<16x64xbf16>, vector<64x64xbf16>, vector<16x64xf32> -> vector<16x64xf32>
    %c0_71 = arith.constant 0 : index
    %c0_72 = arith.constant 0 : index
    %175 = vector.load %arg7[%c0_71, %c0_72] : memref<1x64xf32, #tpu.memory_space<vmem>>, vector<1x64xf32>
    %176 = vector.broadcast %175 : vector<1x64xf32> to vector<16x64xf32>
    %177 = arith.addf %174, %176 : vector<16x64xf32>
    %c0_73 = arith.constant 0 : index
    %c0_74 = arith.constant 0 : index
    %c0_75 = arith.constant 0 : index
    %178 = vector.load %arg8[%c0_73, %c0_74, %c0_75] : memref<1x16x64xf32, #tpu.memory_space<vmem>>, vector<1x16x64xf32>
    %179 = vector.shape_cast %178 : vector<1x16x64xf32> to vector<16x64xf32>
    %180 = vector.shape_cast %177 : vector<16x64xf32> to vector<1x16x64xf32>
    tpu.vector_store %arg8[%c0_73, %c0_74, %c0_75], %180 {strides = array<i32>} : memref<1x16x64xf32, #tpu.memory_space<vmem>>, vector<1x16x64xf32>,
    return
  }
  func.func @transform_0(%arg0: i32) -> (i32, i32, i32) {
    %c0_i32 = arith.constant 0 : i32
    %c0_i32_0 = arith.constant 0 : i32
    %c0_i32_1 = arith.constant 0 : i32
    return %arg0, %c0_i32, %c0_i32_0 : i32, i32, i32
  }
  func.func @transform_1(%arg0: i32) -> (i32, i32) {
    %c0_i32 = arith.constant 0 : i32
    %c0_i32_0 = arith.constant 0 : i32
    %c0_i32_1 = arith.constant 0 : i32
    return %c0_i32, %c0_i32_0 : i32, i32
  }
  func.func @transform_2(%arg0: i32) -> (i32, i32) {
    %c0_i32 = arith.constant 0 : i32
    %c0_i32_0 = arith.constant 0 : i32
    %c0_i32_1 = arith.constant 0 : i32
    return %c0_i32, %c0_i32_0 : i32, i32
  }
  func.func @transform_3(%arg0: i32) -> (i32, i32) {
    %c0_i32 = arith.constant 0 : i32
    %c0_i32_0 = arith.constant 0 : i32
    %c0_i32_1 = arith.constant 0 : i32
    return %c0_i32, %c0_i32_0 : i32, i32
  }
  func.func @transform_4(%arg0: i32) -> (i32, i32) {
    %c0_i32 = arith.constant 0 : i32
    %c0_i32_0 = arith.constant 0 : i32
    %c0_i32_1 = arith.constant 0 : i32
    return %c0_i32, %c0_i32_0 : i32, i32
  }
  func.func @transform_5(%arg0: i32) -> (i32, i32) {
    %c0_i32 = arith.constant 0 : i32
    %c0_i32_0 = arith.constant 0 : i32
    %c0_i32_1 = arith.constant 0 : i32
    return %c0_i32, %c0_i32_0 : i32, i32
  }
  func.func @transform_6(%arg0: i32) -> (i32, i32) {
    %c0_i32 = arith.constant 0 : i32
    %c0_i32_0 = arith.constant 0 : i32
    %c0_i32_1 = arith.constant 0 : i32
    return %c0_i32, %c0_i32_0 : i32, i32
  }
  func.func @transform_7(%arg0: i32) -> (i32, i32, i32) {
    %c0_i32 = arith.constant 0 : i32
    %c0_i32_0 = arith.constant 0 : i32
    %c0_i32_1 = arith.constant 0 : i32
    return %arg0, %c0_i32, %c0_i32_0 : i32, i32, i32
  }
  func.func @transform_8(%arg0: i32) -> (i32, i32, i32, i32) {
    %c0_i32 = arith.constant 0 : i32
    %c0_i32_0 = arith.constant 0 : i32
    %c0_i32_1 = arith.constant 0 : i32
    %c0_i32_2 = arith.constant 0 : i32
    return %arg0, %c0_i32, %c0_i32_0, %c0_i32_1 : i32, i32, i32, i32
  }
}

</mosaic_0001>

<llo_original>
// kernel: tpu_custom_call.1
$region0: #{tpu_custom_call.1}
  #allocation0 [shape = 'u32[]', space=smem, size = 0x4, offset = 0x4, fixed_abs, tag = 'smem constant byte address 0x4 - core index']
  #allocation1 [shape = 'u32[144,128]{1,0:T(1,128)}', space=vmem, size = 0x12000, scoped, tag = 'internal scratch']
  %s0 = inlined_call_operand.hbm [shape: bf16[2,16,64], index: 0, kind: input, shape index: {}]
  %s1 = inlined_call_operand.hbm [shape: f32[4,64], index: 1, kind: input, shape index: {}]
  %s2 = inlined_call_operand.vmem [shape: f32[4,64], index: 2, kind: input, shape index: {}]
  %s3 = inlined_call_operand.hbm [shape: bf16[64,192], index: 3, kind: input, shape index: {}]
  %s4 = inlined_call_operand.vmem [shape: f32[1,192], index: 4, kind: input, shape index: {}]
  %s5 = inlined_call_operand.hbm [shape: bf16[64,64], index: 5, kind: input, shape index: {}]
  %s6 = inlined_call_operand.vmem [shape: f32[1,64], index: 6, kind: input, shape index: {}]
  %s7 = inlined_call_operand.hbm [shape: f32[2,16,64], index: 7, kind: output, shape index: {0}]
  %s8 = inlined_call_operand.hbm [shape: f32[2,8,16,20], index: 8, kind: output, shape index: {1}]
  %9 = xla_tuple %s7, %s8
  %s10 = sld [smem:[#allocation0]]
  $region85: #{tpu_custom_call.1} parent=0
    _
  %s12 = ssub.s32 1, %s10
  %s13 = scalar_select 0, %s12, %s10
  $region1: #{tpu_custom_call.1} parent=0
    #allocation2 [shape = 'u8[8192]{0}', space=vmem, size = 0x2000, scoped, tag = 'input window, operand 0']
    #allocation3 [shape = 's32[2]{0}', space=sflag, size = 0x8, scoped, tag = 'scoped memory for tpu_custom_call.1']
    #allocation4 [shape = 's32[2]{0}', space=sflag, size = 0x8, scoped, tag = 'scoped memory for tpu_custom_call.1']
    #allocation5 [shape = 'u8[2048]{0}', space=vmem, size = 0x800, scoped, tag = 'input window, operand 1, single buffered']
    #allocation6 [shape = 's32[1]{0}', space=sflag, size = 0x4, scoped, tag = 'scoped memory for tpu_custom_call.1']
    #allocation7 [shape = 'u8[32768]{0}', space=vmem, size = 0x8000, scoped, tag = 'input window, operand 3, single buffered']
    #allocation8 [shape = 'u8[16384]{0}', space=vmem, size = 0x4000, scoped, tag = 'input window, operand 5, single buffered']
    #allocation9 [shape = 's32[1]{0}', space=sflag, size = 0x4, scoped, tag = 'scoped memory for tpu_custom_call.1']
    #allocation10 [shape = 'u8[16384]{0}', space=vmem, size = 0x4000, scoped, tag = 'output window, operand 0']
    #allocation11 [shape = 'u8[131072]{0}', space=vmem, size = 0x20000, scoped, tag = 'output window, operand 1']
    #allocation12 [shape = 's32[2]{0}', space=sflag, size = 0x8, scoped, tag = 'scoped memory for tpu_custom_call.1']
    %14 = vsyncpa [#allocation3], 0
    %s15 = scalar_lea.sflag [#allocation3], 1
    %16 = vsyncpa %s15, 0
    %17 = vsyncpa [#allocation6], 0
    %18 = vsyncpa [#allocation9], 0
    %19 = vsyncpa [#allocation4], 0
    %s20 = scalar_lea.sflag [#allocation4], 1
    %21 = vsyncpa %s20, 0
    %22 = vsyncpa [#allocation12], 0
    %s23 = scalar_lea.sflag [#allocation12], 1
    %24 = vsyncpa %s23, 0
    loop: start=0, step=1, limit=4
    $region2: #{tpu_custom_call.1} parent=1 // loop_pre_header
      _
    $region3: #{tpu_custom_call.1} parent=1 // loop_header
      %s26 = sphi 0, %s30
      %p27 = scmp.ge.s32.totalorder %s26, 4
      %s36 = sphi 0, %s38
      %s39 = sphi 0, %s36
      %s40 = sphi 0, %s39
      %s56 = sphi 0, %s40
      %s60 = sphi 0, %s60
      %s62 = sphi 0, %s60
      %s63 = sphi 0, %s62
      %s77 = sphi 0, %s63
      %s81 = sphi 0, %s81
      %s83 = sphi 0, %s81
      %s84 = sphi 0, %s83
      %s98 = sphi 0, %s84
      %s102 = sphi 0, %s102
      %s104 = sphi 0, %s102
      %s105 = sphi 0, %s104
      %s119 = sphi 0, %s105
      %s123 = sphi 0, %s123
      %s125 = sphi 0, %s123
      %s126 = sphi 0, %s125
      %s140 = sphi 0, %s126
      %s144 = sphi 0, %s144
      %s146 = sphi 0, %s144
      %s147 = sphi 0, %s146
      %s161 = sphi 0, %s147
      %s165 = sphi 0, %s165
      %s167 = sphi 0, %s165
      %s168 = sphi 0, %s167
      %s182 = sphi 0, %s168
      %s188 = sphi 0, %s190
      %s191 = sphi 0, %s188
      %s192 = sphi 0, %s191
      %s208 = sphi 0, %s192
      %s214 = sphi 0, %s216
      %s217 = sphi 0, %s214
      %s218 = sphi 0, %s217
      %s234 = sphi 0, %s218
    $region4: #{tpu_custom_call.1} parent=1 // loop_header_branch
      %29 = sbr.rel (%p27) target = $region8
    $region5: #{tpu_custom_call.1} parent=1 // loop_body
      %s31 = ssub.s32 %s26, 1
      %s32 = ssub.s32 %s26, 2
      %s33 = sadd.s32 %s26, 1
      %s34 = ssub.s32 %s26, %s33
      %p35 = scmp.eq.s32.totalorder %s34, 0
      %s37 = sadd.s32 %s36, 1
      %s38 = scalar_select %p35, %s36, %s37
      %p41 = pneg %p35
      %p42 = scmp.eq.s32.totalorder %s26, 1
      %p43 = por %p41, %p42
      %p44 = scmp.ne.s32.totalorder %s36, %s39
      %p45 = scmp.eq.s32.totalorder %s26, 0
      %p46 = por %p44, %p45
      %p47 = scmp.ne.s32.totalorder %s36, %s39
      %p48 = scmp.eq.s32.totalorder %s31, 1
      %p49 = por %p47, %p48
      %p50 = scmp.ne.s32.totalorder %s39, %s40
      %p51 = scmp.eq.s32.totalorder %s31, 0
      %p52 = por %p50, %p51
      %p53 = scmp.ne.s32.totalorder %s39, %s40
      %p54 = scmp.eq.s32.totalorder %s32, 1
      %p55 = por %p53, %p54
      %p57 = scmp.ne.s32.totalorder %s40, %s56
      %p58 = scmp.eq.s32.totalorder %s32, 0
      %p59 = por %p57, %p58
      %s61 = sadd.s32 %s60, 1
      %p64 = scmp.eq.s32.totalorder %s26, 1
      %p65 = scmp.ne.s32.totalorder %s60, %s62
      %p66 = scmp.eq.s32.totalorder %s26, 0
      %p67 = por %p65, %p66
      %p68 = scmp.ne.s32.totalorder %s60, %s62
      %p69 = scmp.eq.s32.totalorder %s31, 1
      %p70 = por %p68, %p69
      %p71 = scmp.ne.s32.totalorder %s62, %s63
      %p72 = scmp.eq.s32.totalorder %s31, 0
      %p73 = por %p71, %p72
      %p74 = scmp.ne.s32.totalorder %s62, %s63
      %p75 = scmp.eq.s32.totalorder %s32, 1
      %p76 = por %p74, %p75
      %p78 = scmp.ne.s32.totalorder %s63, %s77
      %p79 = scmp.eq.s32.totalorder %s32, 0
      %p80 = por %p78, %p79
      %s82 = sadd.s32 %s81, 1
      %p85 = scmp.eq.s32.totalorder %s26, 1
      %p86 = scmp.ne.s32.totalorder %s81, %s83
      %p87 = scmp.eq.s32.totalorder %s26, 0
      %p88 = por %p86, %p87
      %p89 = scmp.ne.s32.totalorder %s81, %s83
      %p90 = scmp.eq.s32.totalorder %s31, 1
      %p91 = por %p89, %p90
      %p92 = scmp.ne.s32.totalorder %s83, %s84
      %p93 = scmp.eq.s32.totalorder %s31, 0
      %p94 = por %p92, %p93
      %p95 = scmp.ne.s32.totalorder %s83, %s84
      %p96 = scmp.eq.s32.totalorder %s32, 1
      %p97 = por %p95, %p96
      %p99 = scmp.ne.s32.totalorder %s84, %s98
      %p100 = scmp.eq.s32.totalorder %s32, 0
      %p101 = por %p99, %p100
      %s103 = sadd.s32 %s102, 1
      %p106 = scmp.eq.s32.totalorder %s26, 1
      %p107 = scmp.ne.s32.totalorder %s102, %s104
      %p108 = scmp.eq.s32.totalorder %s26, 0
      %p109 = por %p107, %p108
      %p110 = scmp.ne.s32.totalorder %s102, %s104
      %p111 = scmp.eq.s32.totalorder %s31, 1
      %p112 = por %p110, %p111
      %p113 = scmp.ne.s32.totalorder %s104, %s105
      %p114 = scmp.eq.s32.totalorder %s31, 0
      %p115 = por %p113, %p114
      %p116 = scmp.ne.s32.totalorder %s104, %s105
      %p117 = scmp.eq.s32.totalorder %s32, 1
      %p118 = por %p116, %p117
      %p120 = scmp.ne.s32.totalorder %s105, %s119
      %p121 = scmp.eq.s32.totalorder %s32, 0
      %p122 = por %p120, %p121
      %s124 = sadd.s32 %s123, 1
      %p127 = scmp.eq.s32.totalorder %s26, 1
      %p128 = scmp.ne.s32.totalorder %s123, %s125
      %p129 = scmp.eq.s32.totalorder %s26, 0
      %p130 = por %p128, %p129
      %p131 = scmp.ne.s32.totalorder %s123, %s125
      %p132 = scmp.eq.s32.totalorder %s31, 1
      %p133 = por %p131, %p132
      %p134 = scmp.ne.s32.totalorder %s125, %s126
      %p135 = scmp.eq.s32.totalorder %s31, 0
      %p136 = por %p134, %p135
      %p137 = scmp.ne.s32.totalorder %s125, %s126
      %p138 = scmp.eq.s32.totalorder %s32, 1
      %p139 = por %p137, %p138
      %p141 = scmp.ne.s32.totalorder %s126, %s140
      %p142 = scmp.eq.s32.totalorder %s32, 0
      %p143 = por %p141, %p142
      %s145 = sadd.s32 %s144, 1
      %p148 = scmp.eq.s32.totalorder %s26, 1
      %p149 = scmp.ne.s32.totalorder %s144, %s146
      %p150 = scmp.eq.s32.totalorder %s26, 0
      %p151 = por %p149, %p150
      %p152 = scmp.ne.s32.totalorder %s144, %s146
      %p153 = scmp.eq.s32.totalorder %s31, 1
      %p154 = por %p152, %p153
      %p155 = scmp.ne.s32.totalorder %s146, %s147
      %p156 = scmp.eq.s32.totalorder %s31, 0
      %p157 = por %p155, %p156
      %p158 = scmp.ne.s32.totalorder %s146, %s147
      %p159 = scmp.eq.s32.totalorder %s32, 1
      %p160 = por %p158, %p159
      %p162 = scmp.ne.s32.totalorder %s147, %s161
      %p163 = scmp.eq.s32.totalorder %s32, 0
      %p164 = por %p162, %p163
      %s166 = sadd.s32 %s165, 1
      %p169 = scmp.eq.s32.totalorder %s26, 1
      %p170 = scmp.ne.s32.totalorder %s165, %s167
      %p171 = scmp.eq.s32.totalorder %s26, 0
      %p172 = por %p170, %p171
      %p173 = scmp.ne.s32.totalorder %s165, %s167
      %p174 = scmp.eq.s32.totalorder %s31, 1
      %p175 = por %p173, %p174
      %p176 = scmp.ne.s32.totalorder %s167, %s168
      %p177 = scmp.eq.s32.totalorder %s31, 0
      %p178 = por %p176, %p177
      %p179 = scmp.ne.s32.totalorder %s167, %s168
      %p180 = scmp.eq.s32.totalorder %s32, 1
      %p181 = por %p179, %p180
      %p183 = scmp.ne.s32.totalorder %s168, %s182
      %p184 = scmp.eq.s32.totalorder %s32, 0
      %p185 = por %p183, %p184
      %s186 = ssub.s32 %s26, %s33
      %p187 = scmp.eq.s32.totalorder %s186, 0
      %s189 = sadd.s32 %s188, 1
      %s190 = scalar_select %p187, %s188, %s189
      %p193 = pneg %p187
      %p194 = scmp.eq.s32.totalorder %s26, 1
      %p195 = por %p193, %p194
      %p196 = scmp.ne.s32.totalorder %s188, %s191
      %p197 = scmp.eq.s32.totalorder %s26, 0
      %p198 = por %p196, %p197
      %p199 = scmp.ne.s32.totalorder %s188, %s191
      %p200 = scmp.eq.s32.totalorder %s31, 1
      %p201 = por %p199, %p200
      %p202 = scmp.ne.s32.totalorder %s191, %s192
      %p203 = scmp.eq.s32.totalorder %s31, 0
      %p204 = por %p202, %p203
      %p205 = scmp.ne.s32.totalorder %s191, %s192
      %p206 = scmp.eq.s32.totalorder %s32, 1
      %p207 = por %p205, %p206
      %p209 = scmp.ne.s32.totalorder %s192, %s208
      %p210 = scmp.eq.s32.totalorder %s32, 0
      %p211 = por %p209, %p210
      %s212 = ssub.s32 %s26, %s33
      %p213 = scmp.eq.s32.totalorder %s212, 0
      %s215 = sadd.s32 %s214, 1
      %s216 = scalar_select %p213, %s214, %s215
      %p219 = pneg %p213
      %p220 = scmp.eq.s32.totalorder %s26, 1
      %p221 = por %p219, %p220
      %p222 = scmp.ne.s32.totalorder %s214, %s217
      %p223 = scmp.eq.s32.totalorder %s26, 0
      %p224 = por %p222, %p223
      %p225 = scmp.ne.s32.totalorder %s214, %s217
      %p226 = scmp.eq.s32.totalorder %s31, 1
      %p227 = por %p225, %p226
      %p228 = scmp.ne.s32.totalorder %s217, %s218
      %p229 = scmp.eq.s32.totalorder %s31, 0
      %p230 = por %p228, %p229
      %p231 = scmp.ne.s32.totalorder %s217, %s218
      %p232 = scmp.eq.s32.totalorder %s32, 1
      %p233 = por %p231, %p232
      %p235 = scmp.ne.s32.totalorder %s218, %s234
      %p236 = scmp.eq.s32.totalorder %s32, 0
      %p237 = por %p235, %p236
      %p238 = scmp.le.s32.totalorder 1, %s26
      %p239 = scmp.lt.s32.totalorder %s26, 3
      %p240 = pnand %p238, %p239
      %p241 = pneg %p240
      // Predicated region
      $region9: #{tpu_custom_call.1} parent=5 // pred_check
        _
      $region10: #{tpu_custom_call.1} parent=5 // pred_check_branch
        %243 = sbr.rel (%p240) target = $region12
      $region11: #{tpu_custom_call.1} parent=5 // pred_region
        %s244 = ssub.s32 %s26, 1
        // Predicated region
        $region13: #{tpu_custom_call.1} parent=11 // pred_check
          %p245 = pneg %p73
        $region14: #{tpu_custom_call.1} parent=11 // pred_check_branch
          %247 = sbr.rel (%p245) target = $region16
        $region15: #{tpu_custom_call.1} parent=11 // pred_region
          %s249 = ssub.s32 64, 64
          %250 = vsyncadd [#allocation6], %s249
          %s252 = sshll.u32 [#allocation5], 4
          %s253 = int_to_ptr.vmem [resolvable:$true] %s252
          %255 = dma.hbm_to_vmem [thread:$0]  %s1, 64, %s253, [#allocation6]
        $region16: #{tpu_custom_call.1} parent=11 // pred_fallthru
          _
        // Predicated region
        $region17: #{tpu_custom_call.1} parent=11 // pred_check
          %p256 = pneg %p94
        $region18: #{tpu_custom_call.1} parent=11 // pred_check_branch
          %258 = sbr.rel (%p256) target = $region20
        $region19: #{tpu_custom_call.1} parent=11 // pred_region
          _
        $region20: #{tpu_custom_call.1} parent=11 // pred_fallthru
          _
        // Predicated region
        $region21: #{tpu_custom_call.1} parent=11 // pred_check
          %p259 = pneg %p115
        $region22: #{tpu_custom_call.1} parent=11 // pred_check_branch
          %261 = sbr.rel (%p259) target = $region24
        $region23: #{tpu_custom_call.1} parent=11 // pred_region
          %s263 = ssub.s32 1024, 1024
          %264 = vsyncadd [#allocation6], %s263
          %s265 = sshll.u32 [#allocation7], 4
          %s266 = int_to_ptr.vmem [resolvable:$true] %s265
          %271 = dma.hbm_to_vmem [thread:$0]  %s3, 1024, %s266, [#allocation6], 128, 128, 8
        $region24: #{tpu_custom_call.1} parent=11 // pred_fallthru
          _
        // Predicated region
        $region25: #{tpu_custom_call.1} parent=11 // pred_check
          %p272 = pneg %p136
        $region26: #{tpu_custom_call.1} parent=11 // pred_check_branch
          %274 = sbr.rel (%p272) target = $region28
        $region27: #{tpu_custom_call.1} parent=11 // pred_region
          _
        $region28: #{tpu_custom_call.1} parent=11 // pred_fallthru
          _
        // Predicated region
        $region29: #{tpu_custom_call.1} parent=11 // pred_check
          %p275 = pneg %p157
        $region30: #{tpu_custom_call.1} parent=11 // pred_check_branch
          %277 = sbr.rel (%p275) target = $region32
        $region31: #{tpu_custom_call.1} parent=11 // pred_region
          %s279 = ssub.s32 512, 512
          %280 = vsyncadd [#allocation9], %s279
          %s281 = sshll.u32 [#allocation8], 4
          %s282 = int_to_ptr.vmem [resolvable:$true] %s281
          %287 = dma.hbm_to_vmem [thread:$0]  %s5, 512, %s282, [#allocation9], 64, 64, 4
        $region32: #{tpu_custom_call.1} parent=11 // pred_fallthru
          _
        // Predicated region
        $region33: #{tpu_custom_call.1} parent=11 // pred_check
          %p288 = pneg %p178
        $region34: #{tpu_custom_call.1} parent=11 // pred_check_branch
          %290 = sbr.rel (%p288) target = $region36
        $region35: #{tpu_custom_call.1} parent=11 // pred_region
          _
        $region36: #{tpu_custom_call.1} parent=11 // pred_fallthru
          _
      $region12: #{tpu_custom_call.1} parent=5 // pred_fallthru
        _
      %p291 = scmp.lt.s32.totalorder %s26, 2
      // Predicated region
      $region37: #{tpu_custom_call.1} parent=5 // pred_check
        %p292 = pneg %p291
      $region38: #{tpu_custom_call.1} parent=5 // pred_check_branch
        %294 = sbr.rel (%p292) target = $region40
      $region39: #{tpu_custom_call.1} parent=5 // pred_region
        // Predicated region
        $region41: #{tpu_custom_call.1} parent=39 // pred_check
          %p295 = pneg %p46
        $region42: #{tpu_custom_call.1} parent=39 // pred_check_branch
          %297 = sbr.rel (%p295) target = $region44
        $region43: #{tpu_custom_call.1} parent=39 // pred_region
          %s298 = sand.u32 %s36, 1
          %s299 = scalar_lea.sflag [#allocation3], %s298
          %s300 = sand.u32 %s36, 1
          %s301 = smul.addr %s300, 8
          %s302 = scalar_lea.vmem [#allocation2], %s301
          %s304 = ssub.s32 128, 128
          %305 = vsyncadd %s299, %s304
          %s306 = smul.addr %s26, 2
          %s307 = smul.addr %s306, 64
          %s308 = scalar_lea.hbm %s0, %s307
          %s309 = sshll.u32 %s302, 4
          %s310 = int_to_ptr.vmem [resolvable:$true] %s309
          %315 = dma.hbm_to_vmem [thread:$0]  %s308, 128, %s310, %s299, 64, 64, 4
        $region44: #{tpu_custom_call.1} parent=39 // pred_fallthru
          _
      $region40: #{tpu_custom_call.1} parent=5 // pred_fallthru
        _
      %p316 = scmp.le.s32.totalorder 1, %s26
      %p317 = scmp.lt.s32.totalorder %s26, 3
      %p318 = pnand %p316, %p317
      %p319 = pneg %p318
      // Predicated region
      $region45: #{tpu_custom_call.1} parent=5 // pred_check
        _
      $region46: #{tpu_custom_call.1} parent=5 // pred_check_branch
        %321 = sbr.rel (%p318) target = $region48
      $region47: #{tpu_custom_call.1} parent=5 // pred_region
        %s322 = ssub.s32 %s26, 1
        %s323 = sand.u32 %s39, 1
        %s324 = scalar_lea.sflag [#allocation3], %s323
        %s325 = sand.u32 %s39, 1
        %s326 = smul.addr %s325, 8
        %s327 = scalar_lea.vmem [#allocation2], %s326
        // Predicated region
        $region49: #{tpu_custom_call.1} parent=47 // pred_check
          %p328 = pneg %p52
        $region50: #{tpu_custom_call.1} parent=47 // pred_check_branch
          %330 = sbr.rel (%p328) target = $region52
        $region51: #{tpu_custom_call.1} parent=47 // pred_region
          %331 = dma.done %s324, 128
        $region52: #{tpu_custom_call.1} parent=47 // pred_fallthru
          _
        // Predicated region
        $region53: #{tpu_custom_call.1} parent=47 // pred_check
          %p332 = pneg %p73
        $region54: #{tpu_custom_call.1} parent=47 // pred_check_branch
          %334 = sbr.rel (%p332) target = $region56
        $region55: #{tpu_custom_call.1} parent=47 // pred_region
          %335 = dma.done [#allocation6], 64
        $region56: #{tpu_custom_call.1} parent=47 // pred_fallthru
          _
        // Predicated region
        $region57: #{tpu_custom_call.1} parent=47 // pred_check
          %p336 = pneg %p115
        $region58: #{tpu_custom_call.1} parent=47 // pred_check_branch
          %338 = sbr.rel (%p336) target = $region60
        $region59: #{tpu_custom_call.1} parent=47 // pred_region
          %339 = dma.done [#allocation6], 1024
        $region60: #{tpu_custom_call.1} parent=47 // pred_fallthru
          _
        // Predicated region
        $region61: #{tpu_custom_call.1} parent=47 // pred_check
          %p340 = pneg %p157
        $region62: #{tpu_custom_call.1} parent=47 // pred_check_branch
          %342 = sbr.rel (%p340) target = $region64
        $region63: #{tpu_custom_call.1} parent=47 // pred_region
          %343 = dma.done [#allocation9], 512
        $region64: #{tpu_custom_call.1} parent=47 // pred_fallthru
          _
        %s344 = sand.u32 %s39, 1
        %s345 = scalar_lea.sflag [#allocation3], %s344
        %s346 = sand.u32 %s39, 1
        %s347 = smul.addr %s346, 8
        %s348 = scalar_lea.vmem [#allocation2], %s347
        %p349 = pneg %p52
        %p350 = pneg %p49
        %p351 = pneg %p73
        %p352 = pneg %p70
        %p353 = pneg %p94
        %p354 = pneg %p91
        %p355 = pneg %p115
        %p356 = pneg %p112
        %p357 = pneg %p136
        %p358 = pneg %p133
        %p359 = pneg %p157
        %p360 = pneg %p154
        %p361 = pneg %p178
        %p362 = pneg %p175
        %p363 = pneg %p204
        %p364 = pneg %p201
        %s365 = sand.u32 %s191, 1
        %s366 = scalar_lea.sflag [#allocation4], %s365
        %s367 = sand.u32 %s191, 1
        %s368 = smul.addr %s367, 16
        %s369 = scalar_lea.vmem [#allocation10], %s368
        %p370 = pneg %p230
        %p371 = pneg %p227
        %s372 = sand.u32 %s217, 1
        %s373 = scalar_lea.sflag [#allocation12], %s372
        %s374 = sand.u32 %s217, 1
        %s375 = smul.addr %s374, 128
        %s376 = scalar_lea.vmem [#allocation11], %s375
        %v378 = vld [vmem:[%s327] sm:$0xf]
        %v379 = vld [vmem:[%s327 + $0x4] sm:$0xf]
        %v380 = vld [vmem:[#allocation7] sm:$0xff]
        %v381 = vld [vmem:[#allocation7 + $0x8] sm:$0xff]
        %v382 = vld [vmem:[#allocation7 + $0x10] sm:$0xff]
        %v383 = vld [vmem:[#allocation7 + $0x18] sm:$0xff]
        %v384 = vld [vmem:[#allocation7 + $0x20] sm:$0xff]
        %v385 = vld [vmem:[#allocation7 + $0x28] sm:$0xff]
        %v386 = vld [vmem:[#allocation7 + $0x30] sm:$0xff]
        %v387 = vld [vmem:[#allocation7 + $0x38] sm:$0xff]
        %v388 = vld [vmem:[%s4] sm:$0x3]
        %v390 = vlaneseq
        %v391 = vshrl.u32 %v390, 7
        %v392 = vsub.s32 0, %v391
        %v393 = vrot.slane %v388, %v392
        %v394 = vlaneseq
        %v395 = vshrl.u32 %v394, 7
        %v396 = vsub.s32 1, %v395
        %v397 = vrot.slane %v388, %v396
        %v402 = vunpack.c.l.b16 %v378
        %v403 = vunpack.c.l.b16 %v379
        %v404 = vpack.c.b16 %v403, %v402
        %v413 = vunpack.c.l.b16 %v380
        %v414 = vunpack.c.h.b16 %v380
        %v415 = vunpack.c.l.b16 %v381
        %v416 = vunpack.c.h.b16 %v381
        %v417 = vunpack.c.l.b16 %v382
        %v418 = vunpack.c.h.b16 %v382
        %v419 = vunpack.c.l.b16 %v383
        %v420 = vunpack.c.h.b16 %v383
        %v421 = vunpack.c.l.b16 %v384
        %v422 = vunpack.c.h.b16 %v384
        %v423 = vunpack.c.l.b16 %v385
        %v424 = vunpack.c.h.b16 %v385
        %v425 = vunpack.c.l.b16 %v386
        %v426 = vunpack.c.h.b16 %v386
        %v427 = vunpack.c.l.b16 %v387
        %v428 = vunpack.c.h.b16 %v387
        %v429 = vpack.c.b16 %v415, %v413
        %v430 = vpack.c.b16 %v416, %v414
        %v431 = vpack.c.b16 %v419, %v417
        %v432 = vpack.c.b16 %v420, %v418
        %v433 = vpack.c.b16 %v423, %v421
        %v434 = vpack.c.b16 %v424, %v422
        %v435 = vpack.c.b16 %v427, %v425
        %v436 = vpack.c.b16 %v428, %v426
        %vm445 = vcmask 523264
        %v447 = vsel %vm445, %v404, 0
        %449 = vmatprep.subr.bf16.mxu0 %v430
        %450 = vmatpush1.bf16.msra.mxu0 %v429
        %451 = vmatprep.subr.bf16.mxu0 %v432
        %452 = vmatpush1.bf16.msra.mxu0 %v431
        %453 = vmatprep.subr.bf16.mxu0 %v434
        %454 = vmatpush1.bf16.msra.mxu0 %v433
        %455 = vmatprep.subr.bf16.mxu0 %v436
        %456 = vmatpush1.bf16.msra.mxu0 %v435
        %457 = vmatprep.subr.bf16.mxu0 0
        %458 = vmatpush1.bf16.msra.mxu0 0
        %459 = vmatprep.subr.bf16.mxu0 0
        %460 = vmatpush1.bf16.msra.mxu0 0
        %461 = vmatprep.subr.bf16.mxu0 0
        %462 = vmatpush1.bf16.msra.mxu0 0
        %463 = vmatprep.subr.bf16.mxu0 0
        %464 = vmatpush1.bf16.msra.mxu0 0
        %465 = vmatprep.subr.bf16.mxu0 0
        %466 = vmatpush1.bf16.msra.mxu0 0
        %467 = vmatprep.subr.bf16.mxu0 0
        %468 = vmatpush1.bf16.msra.mxu0 0
        %469 = vmatprep.subr.bf16.mxu0 0
        %470 = vmatpush1.bf16.msra.mxu0 0
        %471 = vmatprep.subr.bf16.mxu0 0
        %472 = vmatpush1.bf16.msra.mxu0 0
        %473 = vmatprep.subr.bf16.mxu0 0
        %474 = vmatpush1.bf16.msra.mxu0 0
        %475 = vmatprep.subr.bf16.mxu0 0
        %476 = vmatpush1.bf16.msra.mxu0 0
        %477 = vmatprep.subr.bf16.mxu0 0
        %478 = vmatpush1.bf16.msra.mxu0 0
        %479 = vmatprep.subr.bf16.mxu0 0
        %480 = vmatpush1.bf16.msra.mxu0 0
        %481 = vmatprep.mubr.bf16.mxu0 0
        %482 = vmatmul.mubr.bf16.gmra.mrb[0].mxu0 %v447
        %v483 = vpop.f32.mrb[0].mxu0
        %v484 = vadd.f32 %v393, %v483
        %v485 = vpop.f32.mrb[0].mxu0
        %v486 = vadd.f32 %v397, %v485
        %v487 = vpop.f32.mrb[0].mxu0
        %v488 = vadd.f32 %v393, %v487
        %v489 = vpop.f32.mrb[0].mxu0
        %v490 = vadd.f32 %v397, %v489
        %491 = vdwg.mxu0
        %v492 = vmul.f32 %v484, 0.35355338
        %v493 = vmul.f32 %v488, 0.35355338
        %v494 = vpack.c.bf16 %v493, %v492
        %v495 = vld [vmem:[#allocation5] sm:$0xf]
        %vm498 = vcmask 1043456
        %v499 = vrot.slane %v484, 4
        %v500 = vrot.slane %v488, 4
        %v501 = vsel %vm498, %v499, %v500
        %502 = vrot.lane.b32.xlu0 %v499, 64
        %v503 = vpop.permute.xlu0 %502
        %504 = vrot.lane.b32.xlu0 %v501, 64
        %v505 = vpop.permute.xlu0 %504
        %506 = vrot.lane.b32.xlu0 %v500, 64
        %v507 = vpop.permute.xlu0 %506
        %v511 = vsel %vm498, %v495, %v503
        %v512 = vpack.c.bf16 %v505, %v511
        %v513 = vpack.c.bf16 %v507, %v507
        %v514 = vld [vmem:[%s2] sm:$0xf]
        %v517 = vrot.slane %v486, 4
        %v518 = vrot.slane %v490, 4
        %v519 = vsel %vm498, %v517, %v518
        %v523 = vsel %vm498, %v514, %v517
        %v524 = vpack.c.bf16 %v519, %v523
        %v525 = vpack.c.bf16 %v518, %v518
        %vm526 = vcmask 64512
        %v528 = vsel %vm526, %v494, 0
        %v531 = vsel %vm526, %v512, 0
        %v534 = vsel %vm526, %v513, 0
        %536 = vmatprep.subr.bf16.mxu0 0
        %537 = vmatpush1.bf16.xpose.msra.mxu0 %v531
        %538 = vmatprep.subr.bf16.mxu0 0
        %539 = vmatpush1.bf16.xpose.msra.mxu0 %v534
        %540 = vmatprep.subr.bf16.mxu0 0
        %541 = vmatpush1.bf16.xpose.msra.mxu0 0
        %542 = vmatprep.subr.bf16.mxu0 0
        %543 = vmatpush1.bf16.xpose.msra.mxu0 0
        %544 = vmatprep.subr.bf16.mxu0 0
        %545 = vmatpush1.bf16.xpose.msra.mxu0 0
        %546 = vmatprep.subr.bf16.mxu0 0
        %547 = vmatpush1.bf16.xpose.msra.mxu0 0
        %548 = vmatprep.subr.bf16.mxu0 0
        %549 = vmatpush1.bf16.xpose.msra.mxu0 0
        %550 = vmatprep.subr.bf16.mxu0 0
        %551 = vmatpush1.bf16.xpose.msra.mxu0 0
        %552 = vmatprep.subr.bf16.mxu0 0
        %553 = vmatpush1.bf16.xpose.msra.mxu0 0
        %554 = vmatprep.subr.bf16.mxu0 0
        %555 = vmatpush1.bf16.xpose.msra.mxu0 0
        %556 = vmatprep.subr.bf16.mxu0 0
        %557 = vmatpush1.bf16.xpose.msra.mxu0 0
        %558 = vmatprep.subr.bf16.mxu0 0
        %559 = vmatpush1.bf16.xpose.msra.mxu0 0
        %560 = vmatprep.subr.bf16.mxu0 0
        %561 = vmatpush1.bf16.xpose.msra.mxu0 0
        %562 = vmatprep.subr.bf16.mxu0 0
        %563 = vmatpush1.bf16.xpose.msra.mxu0 0
        %564 = vmatprep.subr.bf16.mxu0 0
        %565 = vmatpush1.bf16.xpose.msra.mxu0 0
        %566 = vmatprep.subr.bf16.mxu0 0
        %567 = vmatpush1.bf16.xpose.msra.mxu0 0
        %568 = vmatprep.mubr.bf16.mxu0 0
        %569 = vmatmul.mubr.bf16.gmra.mrb[0].mxu0 %v528
        %v570 = vpop.f32.mrb[0].mxu0
        %v571 = vadd.f32 0.0, %v570
        %v572 = vpop.f32.mrb[0].mxu0
        %v573 = vpop.f32.mrb[0].mxu0
        %v574 = vadd.f32 0.0, %v573
        %v575 = vpop.f32.mrb[0].mxu0
        %576 = vdwg.mxu0
        %vm577 = vcmask 162816
        %v578 = vsel %vm577, %v571, -inf
        %579 = vmax.xlane.f32.xlu0 %v578
        %v580 = vpop.xlane.xlu0 %579
        %v581 = vsel %vm577, %v574, -inf
        %582 = vmax.xlane.f32.xlu0 %v581
        %v583 = vpop.xlane.xlu0 %582
        %v584 = vsub.f32 %v571, %v580
        %v585 = vsub.f32 %v574, %v583
        %v586 = vmul.f32 %v584, 1.442695
        %v587 = vpow.pop %v586
        %v588 = vmul.f32 %v585, 1.442695
        %v589 = vpow.pop %v588
        %v590 = vsel %vm577, %v587, 0.0
        %591 = vadd.xlane.f32.xlu0 %v590
        %v592 = vpop.xlane.xlu0 %591
        %v593 = vsel %vm577, %v589, 0.0
        %594 = vadd.xlane.f32.xlu0 %v593
        %v595 = vpop.xlane.xlu0 %594
        %v596 = vrcp.pop %v592
        %v597 = vrcp.pop %v595
        %v598 = vmul.f32 %v587, %v596
        %v599 = vmul.f32 %v589, %v597
        %600 = vst.msk [vmem:[%s376] sm:$0xff] %vm577, %v598
        %601 = vst.msk [vmem:[%s376 + $0x8] sm:$0xff] %vm577, %v599
        %v602 = vpack.c.bf16 %v599, %v598
        %v604 = vsel %vm577, %v602, 0
        %vm606 = vcmask 1041408
        %v608 = vsel %vm606, %v525, 0
        %610 = vmatprep.subr.bf16.mxu0 0
        %611 = vmatpush1.bf16.msra.mxu0 %v524
        %612 = vmatprep.subr.bf16.mxu0 0
        %613 = vmatpush1.bf16.msra.mxu0 %v608
        %614 = vmatprep.subr.bf16.mxu0 0
        %615 = vmatpush1.bf16.msra.mxu0 0
        %616 = vmatprep.subr.bf16.mxu0 0
        %617 = vmatpush1.bf16.msra.mxu0 0
        %618 = vmatprep.subr.bf16.mxu0 0
        %619 = vmatpush1.bf16.msra.mxu0 0
        %620 = vmatprep.subr.bf16.mxu0 0
        %621 = vmatpush1.bf16.msra.mxu0 0
        %622 = vmatprep.subr.bf16.mxu0 0
        %623 = vmatpush1.bf16.msra.mxu0 0
        %624 = vmatprep.subr.bf16.mxu0 0
        %625 = vmatpush1.bf16.msra.mxu0 0
        %626 = vmatprep.subr.bf16.mxu0 0
        %627 = vmatpush1.bf16.msra.mxu0 0
        %628 = vmatprep.subr.bf16.mxu0 0
        %629 = vmatpush1.bf16.msra.mxu0 0
        %630 = vmatprep.subr.bf16.mxu0 0
        %631 = vmatpush1.bf16.msra.mxu0 0
        %632 = vmatprep.subr.bf16.mxu0 0
        %633 = vmatpush1.bf16.msra.mxu0 0
        %634 = vmatprep.subr.bf16.mxu0 0
        %635 = vmatpush1.bf16.msra.mxu0 0
        %636 = vmatprep.subr.bf16.mxu0 0
        %637 = vmatpush1.bf16.msra.mxu0 0
        %638 = vmatprep.subr.bf16.mxu0 0
        %639 = vmatpush1.bf16.msra.mxu0 0
        %640 = vmatprep.subr.bf16.mxu0 0
        %641 = vmatpush1.bf16.msra.mxu0 0
        %642 = vmatprep.mubr.bf16.mxu0 0
        %643 = vmatmul.mubr.bf16.gmra.mrb[0].mxu0 %v604
        %v644 = vpop.f32.mrb[0].mxu0
        %v645 = vadd.f32 0.0, %v644
        %v646 = vpop.f32.mrb[0].mxu0
        %v647 = vpop.f32.mrb[0].mxu0
        %v648 = vadd.f32 0.0, %v647
        %v649 = vpop.f32.mrb[0].mxu0
        %650 = vdwg.mxu0
        %652 = vrot.lane.b32.xlu0 %v494, 120
        %v653 = vpop.permute.xlu0 %652
        %656 = vrot.lane.b32.xlu0 %v512, 120
        %v657 = vpop.permute.xlu0 %656
        %658 = vrot.lane.b32.xlu0 %v513, 120
        %v659 = vpop.permute.xlu0 %658
        %v661 = vsel %vm526, %v653, 0
        %v664 = vsel %vm526, %v657, 0
        %v667 = vsel %vm526, %v659, 0
        %669 = vmatprep.subr.bf16.mxu0 0
        %670 = vmatpush1.bf16.xpose.msra.mxu0 %v664
        %671 = vmatprep.subr.bf16.mxu0 0
        %672 = vmatpush1.bf16.xpose.msra.mxu0 %v667
        %673 = vmatprep.subr.bf16.mxu0 0
        %674 = vmatpush1.bf16.xpose.msra.mxu0 0
        %675 = vmatprep.subr.bf16.mxu0 0
        %676 = vmatpush1.bf16.xpose.msra.mxu0 0
        %677 = vmatprep.subr.bf16.mxu0 0
        %678 = vmatpush1.bf16.xpose.msra.mxu0 0
        %679 = vmatprep.subr.bf16.mxu0 0
        %680 = vmatpush1.bf16.xpose.msra.mxu0 0
        %681 = vmatprep.subr.bf16.mxu0 0
        %682 = vmatpush1.bf16.xpose.msra.mxu0 0
        %683 = vmatprep.subr.bf16.mxu0 0
        %684 = vmatpush1.bf16.xpose.msra.mxu0 0
        %685 = vmatprep.subr.bf16.mxu0 0
        %686 = vmatpush1.bf16.xpose.msra.mxu0 0
        %687 = vmatprep.subr.bf16.mxu0 0
        %688 = vmatpush1.bf16.xpose.msra.mxu0 0
        %689 = vmatprep.subr.bf16.mxu0 0
        %690 = vmatpush1.bf16.xpose.msra.mxu0 0
        %691 = vmatprep.subr.bf16.mxu0 0
        %692 = vmatpush1.bf16.xpose.msra.mxu0 0
        %693 = vmatprep.subr.bf16.mxu0 0
        %694 = vmatpush1.bf16.xpose.msra.mxu0 0
        %695 = vmatprep.subr.bf16.mxu0 0
        %696 = vmatpush1.bf16.xpose.msra.mxu0 0
        %697 = vmatprep.subr.bf16.mxu0 0
        %698 = vmatpush1.bf16.xpose.msra.mxu0 0
        %699 = vmatprep.subr.bf16.mxu0 0
        %700 = vmatpush1.bf16.xpose.msra.mxu0 0
        %701 = vmatprep.mubr.bf16.mxu0 0
        %702 = vmatmul.mubr.bf16.gmra.mrb[0].mxu0 %v661
        %v703 = vpop.f32.mrb[0].mxu0
        %v704 = vadd.f32 0.0, %v703
        %v705 = vpop.f32.mrb[0].mxu0
        %v706 = vpop.f32.mrb[0].mxu0
        %v707 = vadd.f32 0.0, %v706
        %v708 = vpop.f32.mrb[0].mxu0
        %709 = vdwg.mxu0
        %v710 = vsel %vm577, %v704, -inf
        %711 = vmax.xlane.f32.xlu0 %v710
        %v712 = vpop.xlane.xlu0 %711
        %v713 = vsel %vm577, %v707, -inf
        %714 = vmax.xlane.f32.xlu0 %v713
        %v715 = vpop.xlane.xlu0 %714
        %v716 = vsub.f32 %v704, %v712
        %v717 = vsub.f32 %v707, %v715
        %v718 = vmul.f32 %v716, 1.442695
        %v719 = vpow.pop %v718
        %v720 = vmul.f32 %v717, 1.442695
        %v721 = vpow.pop %v720
        %v722 = vsel %vm577, %v719, 0.0
        %723 = vadd.xlane.f32.xlu0 %v722
        %v724 = vpop.xlane.xlu0 %723
        %v725 = vsel %vm577, %v721, 0.0
        %726 = vadd.xlane.f32.xlu0 %v725
        %v727 = vpop.xlane.xlu0 %726
        %v728 = vrcp.pop %v724
        %v729 = vrcp.pop %v727
        %v730 = vmul.f32 %v719, %v728
        %v731 = vmul.f32 %v721, %v729
        %s732 = scalar_lea.vmem %s376, 16 [#allocation11]
        %733 = vst.msk [vmem:[%s732] sm:$0xff] %vm577, %v730
        %734 = vst.msk [vmem:[%s732 + $0x8] sm:$0xff] %vm577, %v731
        %v735 = vpack.c.bf16 %v731, %v730
        %738 = vrot.lane.b32.xlu0 %v524, 120
        %v739 = vpop.permute.xlu0 %738
        %740 = vrot.lane.b32.xlu0 %v525, 120
        %v741 = vpop.permute.xlu0 %740
        %v744 = vsel %vm577, %v735, 0
        %v747 = vsel %vm606, %v741, 0
        %749 = vmatprep.subr.bf16.mxu0 0
        %750 = vmatpush1.bf16.msra.mxu0 %v739
        %751 = vmatprep.subr.bf16.mxu0 0
        %752 = vmatpush1.bf16.msra.mxu0 %v747
        %753 = vmatprep.subr.bf16.mxu0 0
        %754 = vmatpush1.bf16.msra.mxu0 0
        %755 = vmatprep.subr.bf16.mxu0 0
        %756 = vmatpush1.bf16.msra.mxu0 0
        %757 = vmatprep.subr.bf16.mxu0 0
        %758 = vmatpush1.bf16.msra.mxu0 0
        %759 = vmatprep.subr.bf16.mxu0 0
        %760 = vmatpush1.bf16.msra.mxu0 0
        %761 = vmatprep.subr.bf16.mxu0 0
        %762 = vmatpush1.bf16.msra.mxu0 0
        %763 = vmatprep.subr.bf16.mxu0 0
        %764 = vmatpush1.bf16.msra.mxu0 0
        %765 = vmatprep.subr.bf16.mxu0 0
        %766 = vmatpush1.bf16.msra.mxu0 0
        %767 = vmatprep.subr.bf16.mxu0 0
        %768 = vmatpush1.bf16.msra.mxu0 0
        %769 = vmatprep.subr.bf16.mxu0 0
        %770 = vmatpush1.bf16.msra.mxu0 0
        %771 = vmatprep.subr.bf16.mxu0 0
        %772 = vmatpush1.bf16.msra.mxu0 0
        %773 = vmatprep.subr.bf16.mxu0 0
        %774 = vmatpush1.bf16.msra.mxu0 0
        %775 = vmatprep.subr.bf16.mxu0 0
        %776 = vmatpush1.bf16.msra.mxu0 0
        %777 = vmatprep.subr.bf16.mxu0 0
        %778 = vmatpush1.bf16.msra.mxu0 0
        %779 = vmatprep.subr.bf16.mxu0 0
        %780 = vmatpush1.bf16.msra.mxu0 0
        %781 = vmatprep.mubr.bf16.mxu0 0
        %782 = vmatmul.mubr.bf16.gmra.mrb[0].mxu0 %v744
        %v783 = vpop.f32.mrb[0].mxu0
        %v784 = vadd.f32 0.0, %v783
        %v785 = vpop.f32.mrb[0].mxu0
        %v786 = vpop.f32.mrb[0].mxu0
        %v787 = vadd.f32 0.0, %v786
        %v788 = vpop.f32.mrb[0].mxu0
        %789 = vdwg.mxu0
        %790 = vrot.lane.b32.xlu0 %v494, 112
        %v791 = vpop.permute.xlu0 %790
        %792 = vrot.lane.b32.xlu0 %v512, 112
        %v793 = vpop.permute.xlu0 %792
        %794 = vrot.lane.b32.xlu0 %v513, 112
        %v795 = vpop.permute.xlu0 %794
        %v797 = vsel %vm526, %v791, 0
        %v800 = vsel %vm526, %v793, 0
        %v803 = vsel %vm526, %v795, 0
        %805 = vmatprep.subr.bf16.mxu0 0
        %806 = vmatpush1.bf16.xpose.msra.mxu0 %v800
        %807 = vmatprep.subr.bf16.mxu0 0
        %808 = vmatpush1.bf16.xpose.msra.mxu0 %v803
        %809 = vmatprep.subr.bf16.mxu0 0
        %810 = vmatpush1.bf16.xpose.msra.mxu0 0
        %811 = vmatprep.subr.bf16.mxu0 0
        %812 = vmatpush1.bf16.xpose.msra.mxu0 0
        %813 = vmatprep.subr.bf16.mxu0 0
        %814 = vmatpush1.bf16.xpose.msra.mxu0 0
        %815 = vmatprep.subr.bf16.mxu0 0
        %816 = vmatpush1.bf16.xpose.msra.mxu0 0
        %817 = vmatprep.subr.bf16.mxu0 0
        %818 = vmatpush1.bf16.xpose.msra.mxu0 0
        %819 = vmatprep.subr.bf16.mxu0 0
        %820 = vmatpush1.bf16.xpose.msra.mxu0 0
        %821 = vmatprep.subr.bf16.mxu0 0
        %822 = vmatpush1.bf16.xpose.msra.mxu0 0
        %823 = vmatprep.subr.bf16.mxu0 0
        %824 = vmatpush1.bf16.xpose.msra.mxu0 0
        %825 = vmatprep.subr.bf16.mxu0 0
        %826 = vmatpush1.bf16.xpose.msra.mxu0 0
        %827 = vmatprep.subr.bf16.mxu0 0
        %828 = vmatpush1.bf16.xpose.msra.mxu0 0
        %829 = vmatprep.subr.bf16.mxu0 0
        %830 = vmatpush1.bf16.xpose.msra.mxu0 0
        %831 = vmatprep.subr.bf16.mxu0 0
        %832 = vmatpush1.bf16.xpose.msra.mxu0 0
        %833 = vmatprep.subr.bf16.mxu0 0
        %834 = vmatpush1.bf16.xpose.msra.mxu0 0
        %835 = vmatprep.subr.bf16.mxu0 0
        %836 = vmatpush1.bf16.xpose.msra.mxu0 0
        %837 = vmatprep.mubr.bf16.mxu0 0
        %838 = vmatmul.mubr.bf16.gmra.mrb[0].mxu0 %v797
        %v839 = vpop.f32.mrb[0].mxu0
        %v840 = vadd.f32 0.0, %v839
        %v841 = vpop.f32.mrb[0].mxu0
        %v842 = vpop.f32.mrb[0].mxu0
        %v843 = vadd.f32 0.0, %v842
        %v844 = vpop.f32.mrb[0].mxu0
        %845 = vdwg.mxu0
        %v846 = vsel %vm577, %v840, -inf
        %847 = vmax.xlane.f32.xlu0 %v846
        %v848 = vpop.xlane.xlu0 %847
        %v849 = vsel %vm577, %v843, -inf
        %850 = vmax.xlane.f32.xlu0 %v849
        %v851 = vpop.xlane.xlu0 %850
        %v852 = vsub.f32 %v840, %v848
        %v853 = vsub.f32 %v843, %v851
        %v854 = vmul.f32 %v852, 1.442695
        %v855 = vpow.pop %v854
        %v856 = vmul.f32 %v853, 1.442695
        %v857 = vpow.pop %v856
        %v858 = vsel %vm577, %v855, 0.0
        %859 = vadd.xlane.f32.xlu0 %v858
        %v860 = vpop.xlane.xlu0 %859
        %v861 = vsel %vm577, %v857, 0.0
        %862 = vadd.xlane.f32.xlu0 %v861
        %v863 = vpop.xlane.xlu0 %862
        %v864 = vrcp.pop %v860
        %v865 = vrcp.pop %v863
        %v866 = vmul.f32 %v855, %v864
        %v867 = vmul.f32 %v857, %v865
        %s868 = scalar_lea.vmem %s376, 32 [#allocation11]
        %869 = vst.msk [vmem:[%s868] sm:$0xff] %vm577, %v866
        %870 = vst.msk [vmem:[%s868 + $0x8] sm:$0xff] %vm577, %v867
        %v871 = vpack.c.bf16 %v867, %v866
        %872 = vrot.lane.b32.xlu0 %v524, 112
        %v873 = vpop.permute.xlu0 %872
        %874 = vrot.lane.b32.xlu0 %v525, 112
        %v875 = vpop.permute.xlu0 %874
        %v878 = vsel %vm577, %v871, 0
        %v881 = vsel %vm606, %v875, 0
        %883 = vmatprep.subr.bf16.mxu0 0
        %884 = vmatpush1.bf16.msra.mxu0 %v873
        %885 = vmatprep.subr.bf16.mxu0 0
        %886 = vmatpush1.bf16.msra.mxu0 %v881
        %887 = vmatprep.subr.bf16.mxu0 0
        %888 = vmatpush1.bf16.msra.mxu0 0
        %889 = vmatprep.subr.bf16.mxu0 0
        %890 = vmatpush1.bf16.msra.mxu0 0
        %891 = vmatprep.subr.bf16.mxu0 0
        %892 = vmatpush1.bf16.msra.mxu0 0
        %893 = vmatprep.subr.bf16.mxu0 0
        %894 = vmatpush1.bf16.msra.mxu0 0
        %895 = vmatprep.subr.bf16.mxu0 0
        %896 = vmatpush1.bf16.msra.mxu0 0
        %897 = vmatprep.subr.bf16.mxu0 0
        %898 = vmatpush1.bf16.msra.mxu0 0
        %899 = vmatprep.subr.bf16.mxu0 0
        %900 = vmatpush1.bf16.msra.mxu0 0
        %901 = vmatprep.subr.bf16.mxu0 0
        %902 = vmatpush1.bf16.msra.mxu0 0
        %903 = vmatprep.subr.bf16.mxu0 0
        %904 = vmatpush1.bf16.msra.mxu0 0
        %905 = vmatprep.subr.bf16.mxu0 0
        %906 = vmatpush1.bf16.msra.mxu0 0
        %907 = vmatprep.subr.bf16.mxu0 0
        %908 = vmatpush1.bf16.msra.mxu0 0
        %909 = vmatprep.subr.bf16.mxu0 0
        %910 = vmatpush1.bf16.msra.mxu0 0
        %911 = vmatprep.subr.bf16.mxu0 0
        %912 = vmatpush1.bf16.msra.mxu0 0
        %913 = vmatprep.subr.bf16.mxu0 0
        %914 = vmatpush1.bf16.msra.mxu0 0
        %915 = vmatprep.mubr.bf16.mxu0 0
        %916 = vmatmul.mubr.bf16.gmra.mrb[0].mxu0 %v878
        %v917 = vpop.f32.mrb[0].mxu0
        %v918 = vadd.f32 0.0, %v917
        %v919 = vpop.f32.mrb[0].mxu0
        %v920 = vpop.f32.mrb[0].mxu0
        %v921 = vadd.f32 0.0, %v920
        %v922 = vpop.f32.mrb[0].mxu0
        %923 = vdwg.mxu0
        %924 = vrot.lane.b32.xlu0 %v494, 104
        %v925 = vpop.permute.xlu0 %924
        %926 = vrot.lane.b32.xlu0 %v512, 104
        %v927 = vpop.permute.xlu0 %926
        %928 = vrot.lane.b32.xlu0 %v513, 104
        %v929 = vpop.permute.xlu0 %928
        %v931 = vsel %vm526, %v925, 0
        %v934 = vsel %vm526, %v927, 0
        %v937 = vsel %vm526, %v929, 0
        %939 = vmatprep.subr.bf16.mxu0 0
        %940 = vmatpush1.bf16.xpose.msra.mxu0 %v934
        %941 = vmatprep.subr.bf16.mxu0 0
        %942 = vmatpush1.bf16.xpose.msra.mxu0 %v937
        %943 = vmatprep.subr.bf16.mxu0 0
        %944 = vmatpush1.bf16.xpose.msra.mxu0 0
        %945 = vmatprep.subr.bf16.mxu0 0
        %946 = vmatpush1.bf16.xpose.msra.mxu0 0
        %947 = vmatprep.subr.bf16.mxu0 0
        %948 = vmatpush1.bf16.xpose.msra.mxu0 0
        %949 = vmatprep.subr.bf16.mxu0 0
        %950 = vmatpush1.bf16.xpose.msra.mxu0 0
        %951 = vmatprep.subr.bf16.mxu0 0
        %952 = vmatpush1.bf16.xpose.msra.mxu0 0
        %953 = vmatprep.subr.bf16.mxu0 0
        %954 = vmatpush1.bf16.xpose.msra.mxu0 0
        %955 = vmatprep.subr.bf16.mxu0 0
        %956 = vmatpush1.bf16.xpose.msra.mxu0 0
        %957 = vmatprep.subr.bf16.mxu0 0
        %958 = vmatpush1.bf16.xpose.msra.mxu0 0
        %959 = vmatprep.subr.bf16.mxu0 0
        %960 = vmatpush1.bf16.xpose.msra.mxu0 0
        %961 = vmatprep.subr.bf16.mxu0 0
        %962 = vmatpush1.bf16.xpose.msra.mxu0 0
        %963 = vmatprep.subr.bf16.mxu0 0
        %964 = vmatpush1.bf16.xpose.msra.mxu0 0
        %965 = vmatprep.subr.bf16.mxu0 0
        %966 = vmatpush1.bf16.xpose.msra.mxu0 0
        %967 = vmatprep.subr.bf16.mxu0 0
        %968 = vmatpush1.bf16.xpose.msra.mxu0 0
        %969 = vmatprep.subr.bf16.mxu0 0
        %970 = vmatpush1.bf16.xpose.msra.mxu0 0
        %971 = vmatprep.mubr.bf16.mxu0 0
        %972 = vmatmul.mubr.bf16.gmra.mrb[0].mxu0 %v931
        %v973 = vpop.f32.mrb[0].mxu0
        %v974 = vadd.f32 0.0, %v973
        %v975 = vpop.f32.mrb[0].mxu0
        %v976 = vpop.f32.mrb[0].mxu0
        %v977 = vadd.f32 0.0, %v976
        %v978 = vpop.f32.mrb[0].mxu0
        %979 = vdwg.mxu0
        %v980 = vsel %vm577, %v974, -inf
        %981 = vmax.xlane.f32.xlu0 %v980
        %v982 = vpop.xlane.xlu0 %981
        %v983 = vsel %vm577, %v977, -inf
        %984 = vmax.xlane.f32.xlu0 %v983
        %v985 = vpop.xlane.xlu0 %984
        %v986 = vsub.f32 %v974, %v982
        %v987 = vsub.f32 %v977, %v985
        %v988 = vmul.f32 %v986, 1.442695
        %v989 = vpow.pop %v988
        %v990 = vmul.f32 %v987, 1.442695
        %v991 = vpow.pop %v990
        %v992 = vsel %vm577, %v989, 0.0
        %993 = vadd.xlane.f32.xlu0 %v992
        %v994 = vpop.xlane.xlu0 %993
        %v995 = vsel %vm577, %v991, 0.0
        %996 = vadd.xlane.f32.xlu0 %v995
        %v997 = vpop.xlane.xlu0 %996
        %v998 = vrcp.pop %v994
        %v999 = vrcp.pop %v997
        %v1000 = vmul.f32 %v989, %v998
        %v1001 = vmul.f32 %v991, %v999
        %s1002 = scalar_lea.vmem %s376, 48 [#allocation11]
        %1003 = vst.msk [vmem:[%s1002] sm:$0xff] %vm577, %v1000
        %1004 = vst.msk [vmem:[%s1002 + $0x8] sm:$0xff] %vm577, %v1001
        %v1005 = vpack.c.bf16 %v1001, %v1000
        %1006 = vrot.lane.b32.xlu0 %v524, 104
        %v1007 = vpop.permute.xlu0 %1006
        %1008 = vrot.lane.b32.xlu0 %v525, 104
        %v1009 = vpop.permute.xlu0 %1008
        %v1012 = vsel %vm577, %v1005, 0
        %v1015 = vsel %vm606, %v1009, 0
        %1017 = vmatprep.subr.bf16.mxu0 0
        %1018 = vmatpush1.bf16.msra.mxu0 %v1007
        %1019 = vmatprep.subr.bf16.mxu0 0
        %1020 = vmatpush1.bf16.msra.mxu0 %v1015
        %1021 = vmatprep.subr.bf16.mxu0 0
        %1022 = vmatpush1.bf16.msra.mxu0 0
        %1023 = vmatprep.subr.bf16.mxu0 0
        %1024 = vmatpush1.bf16.msra.mxu0 0
        %1025 = vmatprep.subr.bf16.mxu0 0
        %1026 = vmatpush1.bf16.msra.mxu0 0
        %1027 = vmatprep.subr.bf16.mxu0 0
        %1028 = vmatpush1.bf16.msra.mxu0 0
        %1029 = vmatprep.subr.bf16.mxu0 0
        %1030 = vmatpush1.bf16.msra.mxu0 0
        %1031 = vmatprep.subr.bf16.mxu0 0
        %1032 = vmatpush1.bf16.msra.mxu0 0
        %1033 = vmatprep.subr.bf16.mxu0 0
        %1034 = vmatpush1.bf16.msra.mxu0 0
        %1035 = vmatprep.subr.bf16.mxu0 0
        %1036 = vmatpush1.bf16.msra.mxu0 0
        %1037 = vmatprep.subr.bf16.mxu0 0
        %1038 = vmatpush1.bf16.msra.mxu0 0
        %1039 = vmatprep.subr.bf16.mxu0 0
        %1040 = vmatpush1.bf16.msra.mxu0 0
        %1041 = vmatprep.subr.bf16.mxu0 0
        %1042 = vmatpush1.bf16.msra.mxu0 0
        %1043 = vmatprep.subr.bf16.mxu0 0
        %1044 = vmatpush1.bf16.msra.mxu0 0
        %1045 = vmatprep.subr.bf16.mxu0 0
        %1046 = vmatpush1.bf16.msra.mxu0 0
        %1047 = vmatprep.subr.bf16.mxu0 0
        %1048 = vmatpush1.bf16.msra.mxu0 0
        %1049 = vmatprep.mubr.bf16.mxu0 0
        %1050 = vmatmul.mubr.bf16.gmra.mrb[0].mxu0 %v1012
        %v1051 = vpop.f32.mrb[0].mxu0
        %v1052 = vadd.f32 0.0, %v1051
        %v1053 = vpop.f32.mrb[0].mxu0
        %v1054 = vpop.f32.mrb[0].mxu0
        %v1055 = vadd.f32 0.0, %v1054
        %v1056 = vpop.f32.mrb[0].mxu0
        %1057 = vdwg.mxu0
        %1058 = vrot.lane.b32.xlu0 %v494, 96
        %v1059 = vpop.permute.xlu0 %1058
        %1060 = vrot.lane.b32.xlu0 %v512, 96
        %v1061 = vpop.permute.xlu0 %1060
        %1062 = vrot.lane.b32.xlu0 %v513, 96
        %v1063 = vpop.permute.xlu0 %1062
        %v1065 = vsel %vm526, %v1059, 0
        %v1068 = vsel %vm526, %v1061, 0
        %v1071 = vsel %vm526, %v1063, 0
        %1073 = vmatprep.subr.bf16.mxu0 0
        %1074 = vmatpush1.bf16.xpose.msra.mxu0 %v1068
        %1075 = vmatprep.subr.bf16.mxu0 0
        %1076 = vmatpush1.bf16.xpose.msra.mxu0 %v1071
        %1077 = vmatprep.subr.bf16.mxu0 0
        %1078 = vmatpush1.bf16.xpose.msra.mxu0 0
        %1079 = vmatprep.subr.bf16.mxu0 0
        %1080 = vmatpush1.bf16.xpose.msra.mxu0 0
        %1081 = vmatprep.subr.bf16.mxu0 0
        %1082 = vmatpush1.bf16.xpose.msra.mxu0 0
        %1083 = vmatprep.subr.bf16.mxu0 0
        %1084 = vmatpush1.bf16.xpose.msra.mxu0 0
        %1085 = vmatprep.subr.bf16.mxu0 0
        %1086 = vmatpush1.bf16.xpose.msra.mxu0 0
        %1087 = vmatprep.subr.bf16.mxu0 0
        %1088 = vmatpush1.bf16.xpose.msra.mxu0 0
        %1089 = vmatprep.subr.bf16.mxu0 0
        %1090 = vmatpush1.bf16.xpose.msra.mxu0 0
        %1091 = vmatprep.subr.bf16.mxu0 0
        %1092 = vmatpush1.bf16.xpose.msra.mxu0 0
        %1093 = vmatprep.subr.bf16.mxu0 0
        %1094 = vmatpush1.bf16.xpose.msra.mxu0 0
        %1095 = vmatprep.subr.bf16.mxu0 0
        %1096 = vmatpush1.bf16.xpose.msra.mxu0 0
        %1097 = vmatprep.subr.bf16.mxu0 0
        %1098 = vmatpush1.bf16.xpose.msra.mxu0 0
        %1099 = vmatprep.subr.bf16.mxu0 0
        %1100 = vmatpush1.bf16.xpose.msra.mxu0 0
        %1101 = vmatprep.subr.bf16.mxu0 0
        %1102 = vmatpush1.bf16.xpose.msra.mxu0 0
        %1103 = vmatprep.subr.bf16.mxu0 0
        %1104 = vmatpush1.bf16.xpose.msra.mxu0 0
        %1105 = vmatprep.mubr.bf16.mxu0 0
        %1106 = vmatmul.mubr.bf16.gmra.mrb[0].mxu0 %v1065
        %v1107 = vpop.f32.mrb[0].mxu0
        %v1108 = vadd.f32 0.0, %v1107
        %v1109 = vpop.f32.mrb[0].mxu0
        %v1110 = vpop.f32.mrb[0].mxu0
        %v1111 = vadd.f32 0.0, %v1110
        %v1112 = vpop.f32.mrb[0].mxu0
        %1113 = vdwg.mxu0
        %v1114 = vsel %vm577, %v1108, -inf
        %1115 = vmax.xlane.f32.xlu0 %v1114
        %v1116 = vpop.xlane.xlu0 %1115
        %v1117 = vsel %vm577, %v1111, -inf
        %1118 = vmax.xlane.f32.xlu0 %v1117
        %v1119 = vpop.xlane.xlu0 %1118
        %v1120 = vsub.f32 %v1108, %v1116
        %v1121 = vsub.f32 %v1111, %v1119
        %v1122 = vmul.f32 %v1120, 1.442695
        %v1123 = vpow.pop %v1122
        %v1124 = vmul.f32 %v1121, 1.442695
        %v1125 = vpow.pop %v1124
        %v1126 = vsel %vm577, %v1123, 0.0
        %1127 = vadd.xlane.f32.xlu0 %v1126
        %v1128 = vpop.xlane.xlu0 %1127
        %v1129 = vsel %vm577, %v1125, 0.0
        %1130 = vadd.xlane.f32.xlu0 %v1129
        %v1131 = vpop.xlane.xlu0 %1130
        %v1132 = vrcp.pop %v1128
        %v1133 = vrcp.pop %v1131
        %v1134 = vmul.f32 %v1123, %v1132
        %v1135 = vmul.f32 %v1125, %v1133
        %s1136 = scalar_lea.vmem %s376, 64 [#allocation11]
        %1137 = vst.msk [vmem:[%s1136] sm:$0xff] %vm577, %v1134
        %1138 = vst.msk [vmem:[%s1136 + $0x8] sm:$0xff] %vm577, %v1135
        %v1139 = vpack.c.bf16 %v1135, %v1134
        %1140 = vrot.lane.b32.xlu0 %v524, 96
        %v1141 = vpop.permute.xlu0 %1140
        %1142 = vrot.lane.b32.xlu0 %v525, 96
        %v1143 = vpop.permute.xlu0 %1142
        %v1146 = vsel %vm577, %v1139, 0
        %v1149 = vsel %vm606, %v1143, 0
        %1151 = vmatprep.subr.bf16.mxu0 0
        %1152 = vmatpush1.bf16.msra.mxu0 %v1141
        %1153 = vmatprep.subr.bf16.mxu0 0
        %1154 = vmatpush1.bf16.msra.mxu0 %v1149
        %1155 = vmatprep.subr.bf16.mxu0 0
        %1156 = vmatpush1.bf16.msra.mxu0 0
        %1157 = vmatprep.subr.bf16.mxu0 0
        %1158 = vmatpush1.bf16.msra.mxu0 0
        %1159 = vmatprep.subr.bf16.mxu0 0
        %1160 = vmatpush1.bf16.msra.mxu0 0
        %1161 = vmatprep.subr.bf16.mxu0 0
        %1162 = vmatpush1.bf16.msra.mxu0 0
        %1163 = vmatprep.subr.bf16.mxu0 0
        %1164 = vmatpush1.bf16.msra.mxu0 0
        %1165 = vmatprep.subr.bf16.mxu0 0
        %1166 = vmatpush1.bf16.msra.mxu0 0
        %1167 = vmatprep.subr.bf16.mxu0 0
        %1168 = vmatpush1.bf16.msra.mxu0 0
        %1169 = vmatprep.subr.bf16.mxu0 0
        %1170 = vmatpush1.bf16.msra.mxu0 0
        %1171 = vmatprep.subr.bf16.mxu0 0
        %1172 = vmatpush1.bf16.msra.mxu0 0
        %1173 = vmatprep.subr.bf16.mxu0 0
        %1174 = vmatpush1.bf16.msra.mxu0 0
        %1175 = vmatprep.subr.bf16.mxu0 0
        %1176 = vmatpush1.bf16.msra.mxu0 0
        %1177 = vmatprep.subr.bf16.mxu0 0
        %1178 = vmatpush1.bf16.msra.mxu0 0
        %1179 = vmatprep.subr.bf16.mxu0 0
        %1180 = vmatpush1.bf16.msra.mxu0 0
        %1181 = vmatprep.subr.bf16.mxu0 0
        %1182 = vmatpush1.bf16.msra.mxu0 0
        %1183 = vmatprep.mubr.bf16.mxu0 0
        %1184 = vmatmul.mubr.bf16.gmra.mrb[0].mxu0 %v1146
        %v1185 = vpop.f32.mrb[0].mxu0
        %v1186 = vadd.f32 0.0, %v1185
        %v1187 = vpop.f32.mrb[0].mxu0
        %v1188 = vpop.f32.mrb[0].mxu0
        %v1189 = vadd.f32 0.0, %v1188
        %v1190 = vpop.f32.mrb[0].mxu0
        %1191 = vdwg.mxu0
        %1192 = vrot.lane.b32.xlu0 %v494, 88
        %v1193 = vpop.permute.xlu0 %1192
        %1194 = vrot.lane.b32.xlu0 %v512, 88
        %v1195 = vpop.permute.xlu0 %1194
        %1196 = vrot.lane.b32.xlu0 %v513, 88
        %v1197 = vpop.permute.xlu0 %1196
        %v1199 = vsel %vm526, %v1193, 0
        %v1202 = vsel %vm526, %v1195, 0
        %v1205 = vsel %vm526, %v1197, 0
        %1207 = vmatprep.subr.bf16.mxu0 0
        %1208 = vmatpush1.bf16.xpose.msra.mxu0 %v1202
        %1209 = vmatprep.subr.bf16.mxu0 0
        %1210 = vmatpush1.bf16.xpose.msra.mxu0 %v1205
        %1211 = vmatprep.subr.bf16.mxu0 0
        %1212 = vmatpush1.bf16.xpose.msra.mxu0 0
        %1213 = vmatprep.subr.bf16.mxu0 0
        %1214 = vmatpush1.bf16.xpose.msra.mxu0 0
        %1215 = vmatprep.subr.bf16.mxu0 0
        %1216 = vmatpush1.bf16.xpose.msra.mxu0 0
        %1217 = vmatprep.subr.bf16.mxu0 0
        %1218 = vmatpush1.bf16.xpose.msra.mxu0 0
        %1219 = vmatprep.subr.bf16.mxu0 0
        %1220 = vmatpush1.bf16.xpose.msra.mxu0 0
        %1221 = vmatprep.subr.bf16.mxu0 0
        %1222 = vmatpush1.bf16.xpose.msra.mxu0 0
        %1223 = vmatprep.subr.bf16.mxu0 0
        %1224 = vmatpush1.bf16.xpose.msra.mxu0 0
        %1225 = vmatprep.subr.bf16.mxu0 0
        %1226 = vmatpush1.bf16.xpose.msra.mxu0 0
        %1227 = vmatprep.subr.bf16.mxu0 0
        %1228 = vmatpush1.bf16.xpose.msra.mxu0 0
        %1229 = vmatprep.subr.bf16.mxu0 0
        %1230 = vmatpush1.bf16.xpose.msra.mxu0 0
        %1231 = vmatprep.subr.bf16.mxu0 0
        %1232 = vmatpush1.bf16.xpose.msra.mxu0 0
        %1233 = vmatprep.subr.bf16.mxu0 0
        %1234 = vmatpush1.bf16.xpose.msra.mxu0 0
        %1235 = vmatprep.subr.bf16.mxu0 0
        %1236 = vmatpush1.bf16.xpose.msra.mxu0 0
        %1237 = vmatprep.subr.bf16.mxu0 0
        %1238 = vmatpush1.bf16.xpose.msra.mxu0 0
        %1239 = vmatprep.mubr.bf16.mxu0 0
        %1240 = vmatmul.mubr.bf16.gmra.mrb[0].mxu0 %v1199
        %v1241 = vpop.f32.mrb[0].mxu0
        %v1242 = vadd.f32 0.0, %v1241
        %v1243 = vpop.f32.mrb[0].mxu0
        %v1244 = vpop.f32.mrb[0].mxu0
        %v1245 = vadd.f32 0.0, %v1244
        %v1246 = vpop.f32.mrb[0].mxu0
        %1247 = vdwg.mxu0
        %v1248 = vsel %vm577, %v1242, -inf
        %1249 = vmax.xlane.f32.xlu0 %v1248
        %v1250 = vpop.xlane.xlu0 %1249
        %v1251 = vsel %vm577, %v1245, -inf
        %1252 = vmax.xlane.f32.xlu0 %v1251
        %v1253 = vpop.xlane.xlu0 %1252
        %v1254 = vsub.f32 %v1242, %v1250
        %v1255 = vsub.f32 %v1245, %v1253
        %v1256 = vmul.f32 %v1254, 1.442695
        %v1257 = vpow.pop %v1256
        %v1258 = vmul.f32 %v1255, 1.442695
        %v1259 = vpow.pop %v1258
        %v1260 = vsel %vm577, %v1257, 0.0
        %1261 = vadd.xlane.f32.xlu0 %v1260
        %v1262 = vpop.xlane.xlu0 %1261
        %v1263 = vsel %vm577, %v1259, 0.0
        %1264 = vadd.xlane.f32.xlu0 %v1263
        %v1265 = vpop.xlane.xlu0 %1264
        %v1266 = vrcp.pop %v1262
        %v1267 = vrcp.pop %v1265
        %v1268 = vmul.f32 %v1257, %v1266
        %v1269 = vmul.f32 %v1259, %v1267
        %s1270 = scalar_lea.vmem %s376, 80 [#allocation11]
        %1271 = vst.msk [vmem:[%s1270] sm:$0xff] %vm577, %v1268
        %1272 = vst.msk [vmem:[%s1270 + $0x8] sm:$0xff] %vm577, %v1269
        %v1273 = vpack.c.bf16 %v1269, %v1268
        %1274 = vrot.lane.b32.xlu0 %v524, 88
        %v1275 = vpop.permute.xlu0 %1274
        %1276 = vrot.lane.b32.xlu0 %v525, 88
        %v1277 = vpop.permute.xlu0 %1276
        %v1280 = vsel %vm577, %v1273, 0
        %v1283 = vsel %vm606, %v1277, 0
        %1285 = vmatprep.subr.bf16.mxu0 0
        %1286 = vmatpush1.bf16.msra.mxu0 %v1275
        %1287 = vmatprep.subr.bf16.mxu0 0
        %1288 = vmatpush1.bf16.msra.mxu0 %v1283
        %1289 = vmatprep.subr.bf16.mxu0 0
        %1290 = vmatpush1.bf16.msra.mxu0 0
        %1291 = vmatprep.subr.bf16.mxu0 0
        %1292 = vmatpush1.bf16.msra.mxu0 0
        %1293 = vmatprep.subr.bf16.mxu0 0
        %1294 = vmatpush1.bf16.msra.mxu0 0
        %1295 = vmatprep.subr.bf16.mxu0 0
        %1296 = vmatpush1.bf16.msra.mxu0 0
        %1297 = vmatprep.subr.bf16.mxu0 0
        %1298 = vmatpush1.bf16.msra.mxu0 0
        %1299 = vmatprep.subr.bf16.mxu0 0
        %1300 = vmatpush1.bf16.msra.mxu0 0
        %1301 = vmatprep.subr.bf16.mxu0 0
        %1302 = vmatpush1.bf16.msra.mxu0 0
        %1303 = vmatprep.subr.bf16.mxu0 0
        %1304 = vmatpush1.bf16.msra.mxu0 0
        %1305 = vmatprep.subr.bf16.mxu0 0
        %1306 = vmatpush1.bf16.msra.mxu0 0
        %1307 = vmatprep.subr.bf16.mxu0 0
        %1308 = vmatpush1.bf16.msra.mxu0 0
        %1309 = vmatprep.subr.bf16.mxu0 0
        %1310 = vmatpush1.bf16.msra.mxu0 0
        %1311 = vmatprep.subr.bf16.mxu0 0
        %1312 = vmatpush1.bf16.msra.mxu0 0
        %1313 = vmatprep.subr.bf16.mxu0 0
        %1314 = vmatpush1.bf16.msra.mxu0 0
        %1315 = vmatprep.subr.bf16.mxu0 0
        %1316 = vmatpush1.bf16.msra.mxu0 0
        %1317 = vmatprep.mubr.bf16.mxu0 0
        %1318 = vmatmul.mubr.bf16.gmra.mrb[0].mxu0 %v1280
        %v1319 = vpop.f32.mrb[0].mxu0
        %v1320 = vadd.f32 0.0, %v1319
        %v1321 = vpop.f32.mrb[0].mxu0
        %v1322 = vpop.f32.mrb[0].mxu0
        %v1323 = vadd.f32 0.0, %v1322
        %v1324 = vpop.f32.mrb[0].mxu0
        %1325 = vdwg.mxu0
        %1326 = vrot.lane.b32.xlu0 %v494, 80
        %v1327 = vpop.permute.xlu0 %1326
        %1328 = vrot.lane.b32.xlu0 %v512, 80
        %v1329 = vpop.permute.xlu0 %1328
        %1330 = vrot.lane.b32.xlu0 %v513, 80
        %v1331 = vpop.permute.xlu0 %1330
        %v1333 = vsel %vm526, %v1327, 0
        %v1336 = vsel %vm526, %v1329, 0
        %v1339 = vsel %vm526, %v1331, 0
        %1341 = vmatprep.subr.bf16.mxu0 0
        %1342 = vmatpush1.bf16.xpose.msra.mxu0 %v1336
        %1343 = vmatprep.subr.bf16.mxu0 0
        %1344 = vmatpush1.bf16.xpose.msra.mxu0 %v1339
        %1345 = vmatprep.subr.bf16.mxu0 0
        %1346 = vmatpush1.bf16.xpose.msra.mxu0 0
        %1347 = vmatprep.subr.bf16.mxu0 0
        %1348 = vmatpush1.bf16.xpose.msra.mxu0 0
        %1349 = vmatprep.subr.bf16.mxu0 0
        %1350 = vmatpush1.bf16.xpose.msra.mxu0 0
        %1351 = vmatprep.subr.bf16.mxu0 0
        %1352 = vmatpush1.bf16.xpose.msra.mxu0 0
        %1353 = vmatprep.subr.bf16.mxu0 0
        %1354 = vmatpush1.bf16.xpose.msra.mxu0 0
        %1355 = vmatprep.subr.bf16.mxu0 0
        %1356 = vmatpush1.bf16.xpose.msra.mxu0 0
        %1357 = vmatprep.subr.bf16.mxu0 0
        %1358 = vmatpush1.bf16.xpose.msra.mxu0 0
        %1359 = vmatprep.subr.bf16.mxu0 0
        %1360 = vmatpush1.bf16.xpose.msra.mxu0 0
        %1361 = vmatprep.subr.bf16.mxu0 0
        %1362 = vmatpush1.bf16.xpose.msra.mxu0 0
        %1363 = vmatprep.subr.bf16.mxu0 0
        %1364 = vmatpush1.bf16.xpose.msra.mxu0 0
        %1365 = vmatprep.subr.bf16.mxu0 0
        %1366 = vmatpush1.bf16.xpose.msra.mxu0 0
        %1367 = vmatprep.subr.bf16.mxu0 0
        %1368 = vmatpush1.bf16.xpose.msra.mxu0 0
        %1369 = vmatprep.subr.bf16.mxu0 0
        %1370 = vmatpush1.bf16.xpose.msra.mxu0 0
        %1371 = vmatprep.subr.bf16.mxu0 0
        %1372 = vmatpush1.bf16.xpose.msra.mxu0 0
        %1373 = vmatprep.mubr.bf16.mxu0 0
        %1374 = vmatmul.mubr.bf16.gmra.mrb[0].mxu0 %v1333
        %v1375 = vpop.f32.mrb[0].mxu0
        %v1376 = vadd.f32 0.0, %v1375
        %v1377 = vpop.f32.mrb[0].mxu0
        %v1378 = vpop.f32.mrb[0].mxu0
        %v1379 = vadd.f32 0.0, %v1378
        %v1380 = vpop.f32.mrb[0].mxu0
        %1381 = vdwg.mxu0
        %v1382 = vsel %vm577, %v1376, -inf
        %1383 = vmax.xlane.f32.xlu0 %v1382
        %v1384 = vpop.xlane.xlu0 %1383
        %v1385 = vsel %vm577, %v1379, -inf
        %1386 = vmax.xlane.f32.xlu0 %v1385
        %v1387 = vpop.xlane.xlu0 %1386
        %v1388 = vsub.f32 %v1376, %v1384
        %v1389 = vsub.f32 %v1379, %v1387
        %v1390 = vmul.f32 %v1388, 1.442695
        %v1391 = vpow.pop %v1390
        %v1392 = vmul.f32 %v1389, 1.442695
        %v1393 = vpow.pop %v1392
        %v1394 = vsel %vm577, %v1391, 0.0
        %1395 = vadd.xlane.f32.xlu0 %v1394
        %v1396 = vpop.xlane.xlu0 %1395
        %v1397 = vsel %vm577, %v1393, 0.0
        %1398 = vadd.xlane.f32.xlu0 %v1397
        %v1399 = vpop.xlane.xlu0 %1398
        %v1400 = vrcp.pop %v1396
        %v1401 = vrcp.pop %v1399
        %v1402 = vmul.f32 %v1391, %v1400
        %v1403 = vmul.f32 %v1393, %v1401
        %s1404 = scalar_lea.vmem %s376, 96 [#allocation11]
        %1405 = vst.msk [vmem:[%s1404] sm:$0xff] %vm577, %v1402
        %1406 = vst.msk [vmem:[%s1404 + $0x8] sm:$0xff] %vm577, %v1403
        %v1407 = vpack.c.bf16 %v1403, %v1402
        %1408 = vrot.lane.b32.xlu0 %v524, 80
        %v1409 = vpop.permute.xlu0 %1408
        %1410 = vrot.lane.b32.xlu0 %v525, 80
        %v1411 = vpop.permute.xlu0 %1410
        %v1414 = vsel %vm577, %v1407, 0
        %v1417 = vsel %vm606, %v1411, 0
        %1419 = vmatprep.subr.bf16.mxu0 0
        %1420 = vmatpush1.bf16.msra.mxu0 %v1409
        %1421 = vmatprep.subr.bf16.mxu0 0
        %1422 = vmatpush1.bf16.msra.mxu0 %v1417
        %1423 = vmatprep.subr.bf16.mxu0 0
        %1424 = vmatpush1.bf16.msra.mxu0 0
        %1425 = vmatprep.subr.bf16.mxu0 0
        %1426 = vmatpush1.bf16.msra.mxu0 0
        %1427 = vmatprep.subr.bf16.mxu0 0
        %1428 = vmatpush1.bf16.msra.mxu0 0
        %1429 = vmatprep.subr.bf16.mxu0 0
        %1430 = vmatpush1.bf16.msra.mxu0 0
        %1431 = vmatprep.subr.bf16.mxu0 0
        %1432 = vmatpush1.bf16.msra.mxu0 0
        %1433 = vmatprep.subr.bf16.mxu0 0
        %1434 = vmatpush1.bf16.msra.mxu0 0
        %1435 = vmatprep.subr.bf16.mxu0 0
        %1436 = vmatpush1.bf16.msra.mxu0 0
        %1437 = vmatprep.subr.bf16.mxu0 0
        %1438 = vmatpush1.bf16.msra.mxu0 0
        %1439 = vmatprep.subr.bf16.mxu0 0
        %1440 = vmatpush1.bf16.msra.mxu0 0
        %1441 = vmatprep.subr.bf16.mxu0 0
        %1442 = vmatpush1.bf16.msra.mxu0 0
        %1443 = vmatprep.subr.bf16.mxu0 0
        %1444 = vmatpush1.bf16.msra.mxu0 0
        %1445 = vmatprep.subr.bf16.mxu0 0
        %1446 = vmatpush1.bf16.msra.mxu0 0
        %1447 = vmatprep.subr.bf16.mxu0 0
        %1448 = vmatpush1.bf16.msra.mxu0 0
        %1449 = vmatprep.subr.bf16.mxu0 0
        %1450 = vmatpush1.bf16.msra.mxu0 0
        %1451 = vmatprep.mubr.bf16.mxu0 0
        %1452 = vmatmul.mubr.bf16.gmra.mrb[0].mxu0 %v1414
        %v1453 = vpop.f32.mrb[0].mxu0
        %v1454 = vadd.f32 0.0, %v1453
        %v1455 = vpop.f32.mrb[0].mxu0
        %v1456 = vpop.f32.mrb[0].mxu0
        %v1457 = vadd.f32 0.0, %v1456
        %v1458 = vpop.f32.mrb[0].mxu0
        %1459 = vdwg.mxu0
        %1460 = vrot.lane.b32.xlu0 %v494, 72
        %v1461 = vpop.permute.xlu0 %1460
        %1462 = vrot.lane.b32.xlu0 %v512, 72
        %v1463 = vpop.permute.xlu0 %1462
        %1464 = vrot.lane.b32.xlu0 %v513, 72
        %v1465 = vpop.permute.xlu0 %1464
        %v1467 = vsel %vm526, %v1461, 0
        %v1470 = vsel %vm526, %v1463, 0
        %v1473 = vsel %vm526, %v1465, 0
        %1475 = vmatprep.subr.bf16.mxu0 0
        %1476 = vmatpush1.bf16.xpose.msra.mxu0 %v1470
        %1477 = vmatprep.subr.bf16.mxu0 0
        %1478 = vmatpush1.bf16.xpose.msra.mxu0 %v1473
        %1479 = vmatprep.subr.bf16.mxu0 0
        %1480 = vmatpush1.bf16.xpose.msra.mxu0 0
        %1481 = vmatprep.subr.bf16.mxu0 0
        %1482 = vmatpush1.bf16.xpose.msra.mxu0 0
        %1483 = vmatprep.subr.bf16.mxu0 0
        %1484 = vmatpush1.bf16.xpose.msra.mxu0 0
        %1485 = vmatprep.subr.bf16.mxu0 0
        %1486 = vmatpush1.bf16.xpose.msra.mxu0 0
        %1487 = vmatprep.subr.bf16.mxu0 0
        %1488 = vmatpush1.bf16.xpose.msra.mxu0 0
        %1489 = vmatprep.subr.bf16.mxu0 0
        %1490 = vmatpush1.bf16.xpose.msra.mxu0 0
        %1491 = vmatprep.subr.bf16.mxu0 0
        %1492 = vmatpush1.bf16.xpose.msra.mxu0 0
        %1493 = vmatprep.subr.bf16.mxu0 0
        %1494 = vmatpush1.bf16.xpose.msra.mxu0 0
        %1495 = vmatprep.subr.bf16.mxu0 0
        %1496 = vmatpush1.bf16.xpose.msra.mxu0 0
        %1497 = vmatprep.subr.bf16.mxu0 0
        %1498 = vmatpush1.bf16.xpose.msra.mxu0 0
        %1499 = vmatprep.subr.bf16.mxu0 0
        %1500 = vmatpush1.bf16.xpose.msra.mxu0 0
        %1501 = vmatprep.subr.bf16.mxu0 0
        %1502 = vmatpush1.bf16.xpose.msra.mxu0 0
        %1503 = vmatprep.subr.bf16.mxu0 0
        %1504 = vmatpush1.bf16.xpose.msra.mxu0 0
        %1505 = vmatprep.subr.bf16.mxu0 0
        %1506 = vmatpush1.bf16.xpose.msra.mxu0 0
        %1507 = vmatprep.mubr.bf16.mxu0 0
        %1508 = vmatmul.mubr.bf16.gmra.mrb[0].mxu0 %v1467
        %v1509 = vpop.f32.mrb[0].mxu0
        %v1510 = vadd.f32 0.0, %v1509
        %v1511 = vpop.f32.mrb[0].mxu0
        %v1512 = vpop.f32.mrb[0].mxu0
        %v1513 = vadd.f32 0.0, %v1512
        %v1514 = vpop.f32.mrb[0].mxu0
        %1515 = vdwg.mxu0
        %v1516 = vsel %vm577, %v1510, -inf
        %1517 = vmax.xlane.f32.xlu0 %v1516
        %v1518 = vpop.xlane.xlu0 %1517
        %v1519 = vsel %vm577, %v1513, -inf
        %1520 = vmax.xlane.f32.xlu0 %v1519
        %v1521 = vpop.xlane.xlu0 %1520
        %v1522 = vsub.f32 %v1510, %v1518
        %v1523 = vsub.f32 %v1513, %v1521
        %v1524 = vmul.f32 %v1522, 1.442695
        %v1525 = vpow.pop %v1524
        %v1526 = vmul.f32 %v1523, 1.442695
        %v1527 = vpow.pop %v1526
        %v1528 = vsel %vm577, %v1525, 0.0
        %1529 = vadd.xlane.f32.xlu0 %v1528
        %v1530 = vpop.xlane.xlu0 %1529
        %v1531 = vsel %vm577, %v1527, 0.0
        %1532 = vadd.xlane.f32.xlu0 %v1531
        %v1533 = vpop.xlane.xlu0 %1532
        %v1534 = vrcp.pop %v1530
        %v1535 = vrcp.pop %v1533
        %v1536 = vmul.f32 %v1525, %v1534
        %v1537 = vmul.f32 %v1527, %v1535
        %s1538 = scalar_lea.vmem %s376, 112 [#allocation11]
        %1539 = vst.msk [vmem:[%s1538] sm:$0xff] %vm577, %v1536
        %1540 = vst.msk [vmem:[%s1538 + $0x8] sm:$0xff] %vm577, %v1537
        %v1541 = vpack.c.bf16 %v1537, %v1536
        %1542 = vrot.lane.b32.xlu0 %v524, 72
        %v1543 = vpop.permute.xlu0 %1542
        %1544 = vrot.lane.b32.xlu0 %v525, 72
        %v1545 = vpop.permute.xlu0 %1544
        %v1548 = vsel %vm577, %v1541, 0
        %v1551 = vsel %vm606, %v1545, 0
        %1553 = vmatprep.subr.bf16.mxu0 0
        %1554 = vmatpush1.bf16.msra.mxu0 %v1543
        %1555 = vmatprep.subr.bf16.mxu0 0
        %1556 = vmatpush1.bf16.msra.mxu0 %v1551
        %1557 = vmatprep.subr.bf16.mxu0 0
        %1558 = vmatpush1.bf16.msra.mxu0 0
        %1559 = vmatprep.subr.bf16.mxu0 0
        %1560 = vmatpush1.bf16.msra.mxu0 0
        %1561 = vmatprep.subr.bf16.mxu0 0
        %1562 = vmatpush1.bf16.msra.mxu0 0
        %1563 = vmatprep.subr.bf16.mxu0 0
        %1564 = vmatpush1.bf16.msra.mxu0 0
        %1565 = vmatprep.subr.bf16.mxu0 0
        %1566 = vmatpush1.bf16.msra.mxu0 0
        %1567 = vmatprep.subr.bf16.mxu0 0
        %1568 = vmatpush1.bf16.msra.mxu0 0
        %1569 = vmatprep.subr.bf16.mxu0 0
        %1570 = vmatpush1.bf16.msra.mxu0 0
        %1571 = vmatprep.subr.bf16.mxu0 0
        %1572 = vmatpush1.bf16.msra.mxu0 0
        %1573 = vmatprep.subr.bf16.mxu0 0
        %1574 = vmatpush1.bf16.msra.mxu0 0
        %1575 = vmatprep.subr.bf16.mxu0 0
        %1576 = vmatpush1.bf16.msra.mxu0 0
        %1577 = vmatprep.subr.bf16.mxu0 0
        %1578 = vmatpush1.bf16.msra.mxu0 0
        %1579 = vmatprep.subr.bf16.mxu0 0
        %1580 = vmatpush1.bf16.msra.mxu0 0
        %1581 = vmatprep.subr.bf16.mxu0 0
        %1582 = vmatpush1.bf16.msra.mxu0 0
        %1583 = vmatprep.subr.bf16.mxu0 0
        %1584 = vmatpush1.bf16.msra.mxu0 0
        %1585 = vmatprep.mubr.bf16.mxu0 0
        %1586 = vmatmul.mubr.bf16.gmra.mrb[0].mxu0 %v1548
        %v1587 = vpop.f32.mrb[0].mxu0
        %v1588 = vadd.f32 0.0, %v1587
        %v1589 = vpop.f32.mrb[0].mxu0
        %v1590 = vpop.f32.mrb[0].mxu0
        %v1591 = vadd.f32 0.0, %v1590
        %v1592 = vpop.f32.mrb[0].mxu0
        %1593 = vdwg.mxu0
        %1596 = vrot.lane.b32.xlu0 %v784, 8
        %v1597 = vpop.permute.xlu0 %1596
        %1598 = vrot.lane.b32.xlu0 %v787, 8
        %v1599 = vpop.permute.xlu0 %1598
        %1604 = vrot.lane.b32.xlu0 %v918, 16
        %v1605 = vpop.permute.xlu0 %1604
        %1606 = vrot.lane.b32.xlu0 %v921, 16
        %v1607 = vpop.permute.xlu0 %1606
        %1612 = vrot.lane.b32.xlu0 %v1052, 24
        %v1613 = vpop.permute.xlu0 %1612
        %1614 = vrot.lane.b32.xlu0 %v1055, 24
        %v1615 = vpop.permute.xlu0 %1614
        %1620 = vrot.lane.b32.xlu0 %v1186, 32
        %v1621 = vpop.permute.xlu0 %1620
        %1622 = vrot.lane.b32.xlu0 %v1189, 32
        %v1623 = vpop.permute.xlu0 %1622
        %1628 = vrot.lane.b32.xlu0 %v1320, 40
        %v1629 = vpop.permute.xlu0 %1628
        %1630 = vrot.lane.b32.xlu0 %v1323, 40
        %v1631 = vpop.permute.xlu0 %1630
        %1636 = vrot.lane.b32.xlu0 %v1454, 48
        %v1637 = vpop.permute.xlu0 %1636
        %1638 = vrot.lane.b32.xlu0 %v1457, 48
        %v1639 = vpop.permute.xlu0 %1638
        %1644 = vrot.lane.b32.xlu0 %v1588, 56
        %v1645 = vpop.permute.xlu0 %1644
        %1646 = vrot.lane.b32.xlu0 %v1591, 56
        %v1647 = vpop.permute.xlu0 %1646
        %v1650 = vsel %vm526, %v645, %v1597
        %v1651 = vsel %vm526, %v648, %v1599
        %vm1652 = vcmask 130048
        %v1653 = vsel %vm1652, %v1650, %v1605
        %v1654 = vsel %vm1652, %v1651, %v1607
        %vm1655 = vcmask 195584
        %v1656 = vsel %vm1655, %v1653, %v1613
        %v1657 = vsel %vm1655, %v1654, %v1615
        %vm1658 = vcmask 261120
        %v1659 = vsel %vm1658, %v1656, %v1621
        %v1660 = vsel %vm1658, %v1657, %v1623
        %vm1661 = vcmask 326656
        %v1662 = vsel %vm1661, %v1659, %v1629
        %v1663 = vsel %vm1661, %v1660, %v1631
        %vm1664 = vcmask 392192
        %v1665 = vsel %vm1664, %v1662, %v1637
        %v1666 = vsel %vm1664, %v1663, %v1639
        %vm1667 = vcmask 457728
        %v1668 = vsel %vm1667, %v1665, %v1645
        %v1669 = vsel %vm1667, %v1666, %v1647
        %v1670 = vpack.c.bf16 %v1669, %v1668
        %v1671 = vld [vmem:[#allocation8] sm:$0xf]
        %v1672 = vld [vmem:[#allocation8 + $0x4] sm:$0xf]
        %v1673 = vld [vmem:[#allocation8 + $0x8] sm:$0xf]
        %v1674 = vld [vmem:[#allocation8 + $0xc] sm:$0xf]
        %v1675 = vld [vmem:[#allocation8 + $0x10] sm:$0xf]
        %v1676 = vld [vmem:[#allocation8 + $0x14] sm:$0xf]
        %v1677 = vld [vmem:[#allocation8 + $0x18] sm:$0xf]
        %v1678 = vld [vmem:[#allocation8 + $0x1c] sm:$0xf]
        %v1679 = vld [vmem:[%s6] sm:$0x1]
        %v1681 = vlaneseq
        %v1682 = vshrl.u32 %v1681, 7
        %v1683 = vsub.s32 0, %v1682
        %v1684 = vrot.slane %v1679, %v1683
        %v1694 = vunpack.c.l.b16 %v1671
        %v1695 = vunpack.c.l.b16 %v1672
        %v1696 = vunpack.c.l.b16 %v1673
        %v1697 = vunpack.c.l.b16 %v1674
        %v1698 = vunpack.c.l.b16 %v1675
        %v1699 = vunpack.c.l.b16 %v1676
        %v1700 = vunpack.c.l.b16 %v1677
        %v1701 = vunpack.c.l.b16 %v1678
        %v1702 = vpack.c.b16 %v1695, %v1694
        %v1703 = vpack.c.b16 %v1697, %v1696
        %v1704 = vpack.c.b16 %v1699, %v1698
        %v1705 = vpack.c.b16 %v1701, %v1700
        %v1711 = vsel %vm445, %v1670, 0
        %1713 = vmatprep.subr.bf16.mxu0 0
        %1714 = vmatpush1.bf16.msra.mxu0 %v1702
        %1715 = vmatprep.subr.bf16.mxu0 0
        %1716 = vmatpush1.bf16.msra.mxu0 %v1703
        %1717 = vmatprep.subr.bf16.mxu0 0
        %1718 = vmatpush1.bf16.msra.mxu0 %v1704
        %1719 = vmatprep.subr.bf16.mxu0 0
        %1720 = vmatpush1.bf16.msra.mxu0 %v1705
        %1721 = vmatprep.subr.bf16.mxu0 0
        %1722 = vmatpush1.bf16.msra.mxu0 0
        %1723 = vmatprep.subr.bf16.mxu0 0
        %1724 = vmatpush1.bf16.msra.mxu0 0
        %1725 = vmatprep.subr.bf16.mxu0 0
        %1726 = vmatpush1.bf16.msra.mxu0 0
        %1727 = vmatprep.subr.bf16.mxu0 0
        %1728 = vmatpush1.bf16.msra.mxu0 0
        %1729 = vmatprep.subr.bf16.mxu0 0
        %1730 = vmatpush1.bf16.msra.mxu0 0
        %1731 = vmatprep.subr.bf16.mxu0 0
        %1732 = vmatpush1.bf16.msra.mxu0 0
        %1733 = vmatprep.subr.bf16.mxu0 0
        %1734 = vmatpush1.bf16.msra.mxu0 0
        %1735 = vmatprep.subr.bf16.mxu0 0
        %1736 = vmatpush1.bf16.msra.mxu0 0
        %1737 = vmatprep.subr.bf16.mxu0 0
        %1738 = vmatpush1.bf16.msra.mxu0 0
        %1739 = vmatprep.subr.bf16.mxu0 0
        %1740 = vmatpush1.bf16.msra.mxu0 0
        %1741 = vmatprep.subr.bf16.mxu0 0
        %1742 = vmatpush1.bf16.msra.mxu0 0
        %1743 = vmatprep.subr.bf16.mxu0 0
        %1744 = vmatpush1.bf16.msra.mxu0 0
        %1745 = vmatprep.mubr.bf16.mxu0 0
        %1746 = vmatmul.mubr.bf16.gmra.mrb[0].mxu0 %v1711
        %v1747 = vpop.f32.mrb[0].mxu0
        %v1748 = vadd.f32 %v1684, %v1747
        %v1749 = vpop.f32.mrb[0].mxu0
        %v1750 = vpop.f32.mrb[0].mxu0
        %v1751 = vadd.f32 %v1684, %v1750
        %v1752 = vpop.f32.mrb[0].mxu0
        %1753 = vdwg.mxu0
        %1754 = vst.msk [vmem:[%s369] sm:$0xff] %vm445, %v1748
        %1755 = vst.msk [vmem:[%s369 + $0x8] sm:$0xff] %vm445, %v1751
        %s1756 = sand.u32 %s191, 1
        %s1757 = scalar_lea.sflag [#allocation4], %s1756
        %s1758 = sand.u32 %s191, 1
        %s1759 = smul.addr %s1758, 16
        %s1760 = scalar_lea.vmem [#allocation10], %s1759
        %s1761 = sand.u32 %s217, 1
        %s1762 = scalar_lea.sflag [#allocation12], %s1761
        %s1763 = sand.u32 %s217, 1
        %s1764 = smul.addr %s1763, 128
        %s1765 = scalar_lea.vmem [#allocation11], %s1764
        // Predicated region
        $region65: #{tpu_custom_call.1} parent=47 // pred_check
          %p1766 = pneg %p201
        $region66: #{tpu_custom_call.1} parent=47 // pred_check_branch
          %1768 = sbr.rel (%p1766) target = $region68
        $region67: #{tpu_custom_call.1} parent=47 // pred_region
          %s1770 = ssub.s32 256, 256
          %1771 = vsyncadd %s1757, %s1770
          %s1772 = smul.addr %s31, 2
          %s1773 = smul.addr %s1772, 128
          %s1774 = scalar_lea.hbm %s7, %s1773
          %s1775 = sshll.u32 %s1760, 4
          %s1776 = int_to_ptr.vmem [resolvable:$true] %s1775
          %1781 = dma.vmem_to_hbm [thread:$0]  %s1776, 256, %s1774, %s1757, 128, 128, 8
        $region68: #{tpu_custom_call.1} parent=47 // pred_fallthru
          _
        // Predicated region
        $region69: #{tpu_custom_call.1} parent=47 // pred_check
          %p1782 = pneg %p227
        $region70: #{tpu_custom_call.1} parent=47 // pred_check_branch
          %1784 = sbr.rel (%p1782) target = $region72
        $region71: #{tpu_custom_call.1} parent=47 // pred_region
          %s1786 = ssub.s32 2048, 2048
          %1787 = vsyncadd %s1762, %s1786
          %s1788 = smul.addr %s31, 16
          %s1789 = smul.addr %s1788, 128
          %s1790 = scalar_lea.hbm %s8, %s1789
          %s1791 = sshll.u32 %s1765, 4
          %s1792 = int_to_ptr.vmem [resolvable:$true] %s1791
          %1797 = dma.vmem_to_hbm [thread:$0]  %s1792, 2048, %s1790, %s1762, 128, 128, 8
        $region72: #{tpu_custom_call.1} parent=47 // pred_fallthru
          _
      $region48: #{tpu_custom_call.1} parent=5 // pred_fallthru
        _
      %p1798 = scmp.le.s32.totalorder 2, %s26
      // Predicated region
      $region73: #{tpu_custom_call.1} parent=5 // pred_check
        %p1799 = pneg %p1798
      $region74: #{tpu_custom_call.1} parent=5 // pred_check_branch
        %1801 = sbr.rel (%p1799) target = $region76
      $region75: #{tpu_custom_call.1} parent=5 // pred_region
        %s1802 = ssub.s32 %s26, 2
        // Predicated region
        $region77: #{tpu_custom_call.1} parent=75 // pred_check
          %p1803 = pneg %p207
        $region78: #{tpu_custom_call.1} parent=75 // pred_check_branch
          %1805 = sbr.rel (%p1803) target = $region80
        $region79: #{tpu_custom_call.1} parent=75 // pred_region
          %s1806 = sand.u32 %s192, 1
          %s1807 = scalar_lea.sflag [#allocation4], %s1806
          %s1808 = sand.u32 %s192, 1
          %s1809 = smul.addr %s1808, 16
          %s1810 = scalar_lea.vmem [#allocation10], %s1809
          %1811 = dma.done %s1807, 256
        $region80: #{tpu_custom_call.1} parent=75 // pred_fallthru
          _
        // Predicated region
        $region81: #{tpu_custom_call.1} parent=75 // pred_check
          %p1812 = pneg %p233
        $region82: #{tpu_custom_call.1} parent=75 // pred_check_branch
          %1814 = sbr.rel (%p1812) target = $region84
        $region83: #{tpu_custom_call.1} parent=75 // pred_region
          %s1815 = sand.u32 %s218, 1
          %s1816 = scalar_lea.sflag [#allocation12], %s1815
          %s1817 = sand.u32 %s218, 1
          %s1818 = smul.addr %s1817, 128
          %s1819 = scalar_lea.vmem [#allocation11], %s1818
          %1820 = dma.done %s1816, 2048
        $region84: #{tpu_custom_call.1} parent=75 // pred_fallthru
          _
      $region76: #{tpu_custom_call.1} parent=5 // pred_fallthru
        _
    $region6: #{tpu_custom_call.1} parent=1 // loop_footer
      %s30 = sadd.s32 1, %s26
    $region7: #{tpu_custom_call.1} parent=1 // loop_footer_branch
      %25 = sbr.rel target = $region3
    $region8: #{tpu_custom_call.1} parent=1 // loop_exit
      _
    %1821 = vsyncpa [#allocation3], 1
    %s1822 = scalar_lea.sflag [#allocation3], 1
    %1823 = vsyncpa %s1822, 1
    %1824 = vsyncpa [#allocation6], 1
    %1825 = vsyncpa [#allocation9], 1
    %1826 = vsyncpa [#allocation4], 1
    %s1827 = scalar_lea.sflag [#allocation4], 1
    %1828 = vsyncpa %s1827, 1
    %1829 = vsyncpa [#allocation12], 1
    %s1830 = scalar_lea.sflag [#allocation12], 1
    %1831 = vsyncpa %s1830, 1

</llo_original>
